<compile_context>
chip_gen: v6e
topology: v6e:2x2x1
jax: 0.10.0
libtpu: 0.0.40
codegen_flags: <defaults>
</compile_context>

<pallas_src>
import functools

import jax
import jax.numpy as jnp
import numpy as np
from jax.experimental import pallas as pl
from jax.experimental.pallas import tpu as pltpu

EPS = 1e-5
LANE = 128


def _round_up(x, m):
    return (x + m - 1) // m * m


@functools.lru_cache(maxsize=None)
def _vmem_limit_bytes():
    # Per-generation VMEM budget: ~3/4 of physical, capped at 96 MiB.
    #   v7x: 64 MiB physical -> 48 MiB budget;  v5e / v6e: 128 MiB -> 96 MiB.
    try:
        phys = int(pltpu.get_tpu_info().vmem_capacity_bytes)
    except Exception:
        phys = 64 * 1024 * 1024
    return min(phys * 3 // 4, 96 * 1024 * 1024)


def _compiler_params():
    return pltpu.CompilerParams(dimension_semantics=("parallel",),
                                vmem_limit_bytes=_vmem_limit_bytes())


# ----------------------------- Pallas kernels -----------------------------
def _tile_stats(acc, l_out):
    """Per-tile BN partials from the f32 accumulator: row0 = sum, row1 = centered sum-of-squares."""
    s = jnp.sum(acc, axis=0, keepdims=True)                    # (1, CP)
    mu = s * (1.0 / l_out)
    d = acc - mu
    ssc = jnp.sum(d * d, axis=0, keepdims=True)                # (1, CP)
    return jnp.concatenate([s, ssc], axis=0)                   # (2, CP)


def _conv_stats_kernel(x_ref, w_ref, y_ref, stats_ref, *, l_out, k, stride):
    """conv1d as K shifted matmuls (bf16 MXU inputs, f32 accumulator) + BN partials."""
    if stride == 1:
        taps = [x_ref[0, t:t + l_out, :] for t in range(k)]    # direct bf16 ref slices
    else:
        # TODO(synk): move to a strided pl.ds ref read once profiled; stride>1 path is not
        # exercised by the default first_stride=1 configuration.
        xw = x_ref[0]
        taps = [jax.lax.slice(xw, (t, 0),
                              (t + (l_out - 1) * stride + 1, xw.shape[1]), (stride, 1))
                for t in range(k)]
    acc = jnp.dot(taps[0], w_ref[0], preferred_element_type=jnp.float32)
    for t in range(1, k):
        acc = acc + jnp.dot(taps[t], w_ref[t], preferred_element_type=jnp.float32)
    # TODO(synk): if real channel counts make this MXU-bound on v6e/v7x, concatenate the K taps
    # into a single K*CP-deep contraction to fill the 256-deep MXU.
    y_ref[0] = acc.astype(y_ref.dtype)                         # bf16 intermediate
    stats_ref[0] = _tile_stats(acc, l_out)


def _bn_relu_conv_stats_kernel(y1_ref, ss_ref, w_ref, y2_ref, stats_ref, hpad_ref, *, l_out, k):
    """Folded bn1 (scale/shift) + relu, then conv2 + stats2.  h never leaves VMEM."""
    cp = y2_ref.shape[-1]
    l1 = y1_ref.shape[1]
    scale = ss_ref[0:1, :]                                     # (1, CP) f32
    shift = ss_ref[1:2, :]
    h = jnp.maximum(y1_ref[0] * scale + shift, 0.0)            # (L1, CP) f32 (bf16*f32 promotes)
    # conv2's zero padding lives in the scratch halo rows; h is stored sublane-aligned at row 8.
    # The halo bands are re-zeroed every step, so the kernel carries no cross-step state
    # (safe under megacore "parallel" sharding of the batch axis).
    hpad_ref[0:8, :] = jnp.zeros((8, cp), jnp.float32)
    hpad_ref[8 + l1:16 + l1, :] = jnp.zeros((8, cp), jnp.float32)
    hpad_ref[8:8 + l1, :] = h
    acc = jnp.dot(hpad_ref[7:7 + l_out, :].astype(jnp.bfloat16), w_ref[0],
                  preferred_element_type=jnp.float32)
    for t in range(1, k):
        acc = acc + jnp.dot(hpad_ref[7 + t:7 + t + l_out, :].astype(jnp.bfloat16), w_ref[t],
                            preferred_element_type=jnp.float32)
    y2_ref[0] = acc.astype(y2_ref.dtype)                       # bf16 intermediate
    stats_ref[0] = _tile_stats(acc, l_out)


def _bn_relu_kernel(y_ref, ss_ref, out_ref):
    """Final folded bn + relu over lane-dense (L, CP) tiles."""
    # TODO(synk): fuse the (L2,CP)->(C_out,L2) transpose + channel slice here (after padding L2
    # to a multiple of 128) to drop the host-side pass over all CP lanes of the output.
    out_ref[0] = jnp.maximum(y_ref[0] * ss_ref[0:1, :] + ss_ref[1:2, :], 0.0)


# --------------------------- pallas_call wrappers --------------------------
def _conv_stats_pass(x_pad, w_taps, *, l_out, stride):
    n, lp, cp_in = x_pad.shape
    k, _, cp_out = w_taps.shape
    kernel = functools.partial(_conv_stats_kernel, l_out=l_out, k=k, stride=stride)
    return pl.pallas_call(
        kernel,
        out_shape=(jax.ShapeDtypeStruct((n, l_out, cp_out), jnp.bfloat16),
                   jax.ShapeDtypeStruct((n, 2, cp_out), jnp.float32)),
        grid=(n,),
        in_specs=[pl.BlockSpec((1, lp, cp_in), lambda i: (i, 0, 0)),
                  pl.BlockSpec((k, cp_in, cp_out), lambda i: (0, 0, 0))],
        out_specs=(pl.BlockSpec((1, l_out, cp_out), lambda i: (i, 0, 0)),
                   pl.BlockSpec((1, 2, cp_out), lambda i: (i, 0, 0))),
        compiler_params=_compiler_params(),
    )(x_pad, w_taps)


def _bn_relu_conv_stats_pass(y1, ss1, w_taps, *, l_out):
    n, l1, cp = y1.shape
    k = w_taps.shape[0]
    kernel = functools.partial(_bn_relu_conv_stats_kernel, l_out=l_out, k=k)
    return pl.pallas_call(
        kernel,
        out_shape=(jax.ShapeDtypeStruct((n, l_out, cp), jnp.bfloat16),
                   jax.ShapeDtypeStruct((n, 2, cp), jnp.float32)),
        grid=(n,),
        in_specs=[pl.BlockSpec((1, l1, cp), lambda i: (i, 0, 0)),
                  pl.BlockSpec((2, cp), lambda i: (0, 0)),
                  pl.BlockSpec((k, cp, cp), lambda i: (0, 0, 0))],
        out_specs=(pl.BlockSpec((1, l_out, cp), lambda i: (i, 0, 0)),
                   pl.BlockSpec((1, 2, cp), lambda i: (i, 0, 0))),
        scratch_shapes=[pltpu.VMEM((l1 + 16, cp), jnp.float32)],   # h + zero halo bands
        compiler_params=_compiler_params(),
    )(y1, ss1, w_taps)


def _bn_relu_pass(y, ss):
    n, l, cp = y.shape
    return pl.pallas_call(
        _bn_relu_kernel,
        out_shape=jax.ShapeDtypeStruct((n, l, cp), jnp.float32),
        grid=(n,),
        in_specs=[pl.BlockSpec((1, l, cp), lambda i: (i, 0, 0)),
                  pl.BlockSpec((2, cp), lambda i: (0, 0))],
        out_specs=pl.BlockSpec((1, l, cp), lambda i: (i, 0, 0)),
        compiler_params=_compiler_params(),
    )(y, ss)


# ------------------------------ host-side glue -----------------------------
def _prep_input(x, cp_in, pad):
    # (N, C, L) -> channels-last (N, L+2*pad, CP_in), zero-padded, bf16 for the MXU stream.
    n, c, l = x.shape
    xt = jnp.transpose(x, (0, 2, 1))
    xt = jnp.pad(xt, ((0, 0), (pad, pad), (0, cp_in - c)))
    return xt.astype(jnp.bfloat16)


def _prep_weight(w, cp_in, cp_out):
    # (C_out, C_in, K) -> per-tap (K, CP_in, CP_out), zero-padded, bf16.
    c_out, c_in, k = w.shape
    wt = jnp.transpose(w, (2, 1, 0))
    wt = jnp.pad(wt, ((0, 0), (0, cp_in - c_in), (0, cp_out - c_out)))
    return wt.astype(jnp.bfloat16)


def _fold_bn(stats, gamma, beta, rows_per_tile, cp):
    """Combine per-tile (sum, centered sumsq) partials (parallel-variance / Chan formula) and
    fold train-mode BN into a single per-channel (scale, shift)."""
    s_t = stats[:, 0, :]                                       # (T, CP) per-tile sums
    ssc_t = stats[:, 1, :]                                     # (T, CP) per-tile centered sumsq
    m = stats.shape[0] * rows_per_tile
    mean = jnp.sum(s_t, axis=0) / m
    mu_t = s_t / rows_per_tile
    var = (jnp.sum(ssc_t, axis=0) + rows_per_tile * jnp.sum((mu_t - mean) ** 2, axis=0)) / m
    var = jnp.maximum(var, 0.0)                                # biased variance
    g = jnp.pad(gamma, (0, cp - gamma.shape[0])).astype(jnp.float32)   # padded lanes -> gamma 0
    b = jnp.pad(beta, (0, cp - beta.shape[0])).astype(jnp.float32)
    scale = g * jax.lax.rsqrt(var + EPS)
    shift = b - mean * scale
    return jnp.stack([scale, shift], axis=0)                   # (2, CP) f32


def convolutional_block(x, params, first_stride=1):
    """Pallas implementation of ConvolutionalBlock.forward.  x: (N, C_in, L) -> (N, C_out, L_out)."""
    # Conv biases are exact no-ops under train-mode BN (batch statistics); they would need to be
    # reinstated for eval-mode running-stat BN.
    (w1, _b1, g1, be1), (w2, _b2, g2, be2) = params
    n, c_in, l = x.shape
    c_out, _, k = w1.shape
    pad = 1
    cp_in = _round_up(max(c_in, LANE), LANE)
    cp = _round_up(max(c_out, LANE), LANE)
    l1 = (l + 2 * pad - k) // first_stride + 1
    l2 = (l1 + 2 * pad - k) + 1

    x_pad = _prep_input(x, cp_in, pad)
    w1t = _prep_weight(w1, cp_in, cp)
    w2t = _prep_weight(w2, cp, cp)

    y1, st1 = _conv_stats_pass(x_pad, w1t, l_out=l1, stride=first_stride)   # conv1 + stats1
    ss1 = _fold_bn(st1, g1, be1, l1, cp)
    y2, st2 = _bn_relu_conv_stats_pass(y1, ss1, w2t, l_out=l2)              # bn1+relu+conv2+stats2
    ss2 = _fold_bn(st2, g2, be2, l2, cp)
    out = _bn_relu_pass(y2, ss2)                                            # bn2+relu, lane-dense
    # Padded channel lanes are exactly zero (gamma/beta padded with 0); slice them off, back to NCL.
    # TODO(synk): for long sequences, tile the L axis with a (k-1)-row halo (windowed y1 layout or
    # pl.Element blocks) so the per-step f32 accumulator / VMEM working set is O(L_tile); then
    # consider pipeline_mode=pl.Buffered(3) on the streaming inputs if DMA is exposed.
    return out[:, :, :c_out].transpose(0, 2, 1)


# --------------------------- pure-JAX references ---------------------------
def _reference_block_f32(x, params, first_stride=1):
    def conv1d(x, w, b, stride):
        y = jax.lax.conv_general_dilated(
            x, w, window_strides=(stride,), padding=[(1, 1)],
            dimension_numbers=("NCH", "OIH", "NCH"))
        return y + b[None, :, None]

    def bn_relu(y, g, be):
        mean = jnp.mean(y, axis=(0, 2), keepdims=True)
        var = jnp.mean((y - mean) ** 2, axis=(0, 2), keepdims=True)
        yh = (y - mean) / jnp.sqrt(var + EPS)
        return jnp.maximum(yh * g[None, :, None] + be[None, :, None], 0.0)

    (w1, b1, g1, be1), (w2, b2, g2, be2) = params
    h = bn_relu(conv1d(x, w1, b1, first_stride), g1, be1)
    return bn_relu(conv1d(h, w2, b2, 1), g2, be2)


def _reference_block_mixed(x, params, first_stride=1):
    """Mirrors the kernel's precision: bf16 conv inputs, f32 accumulation, BN stats from the f32
    conv output, normalization applied to the bf16-stored intermediate, conv bias folded away."""
    def conv1d(x_f32, w, stride):
        return jax.lax.conv_general_dilated(
            x_f32.astype(jnp.bfloat16), w.astype(jnp.bfloat16),
            window_strides=(stride,), padding=[(1, 1)],
            dimension_numbers=("NCH", "OIH", "NCH"),
            preferred_element_type=jnp.float32)

    def bn_relu_bf16(y_f32, g, be):
        mean = jnp.mean(y_f32, axis=(0, 2))
        var = jnp.mean((y_f32 - mean[None, :, None]) ** 2, axis=(0, 2))
        scale = (g * jax.lax.rsqrt(var + EPS))[None, :, None]
        shift = (be - mean * g * jax.lax.rsqrt(var + EPS))[None, :, None]
        y_b = y_f32.astype(jnp.bfloat16).astype(jnp.float32)   # bf16-stored intermediate
        return jnp.maximum(y_b * scale + shift, 0.0)

    (w1, _b1, g1, be1), (w2, _b2, g2, be2) = params
    h = bn_relu_bf16(conv1d(x, w1, first_stride), g1, be1)
    return bn_relu_bf16(conv1d(h, w2, 1), g2, be2)


# --------------------------------- main -----------------------------------
def _init_params(key, in_channels, out_channels, k=3):
    k1, k2, k3, k4 = jax.random.split(key, 4)
    w1 = 0.3 * jax.random.normal(k1, (out_channels, in_channels, k), jnp.float32)
    b1 = 0.1 * jax.random.normal(k2, (out_channels,), jnp.float32)
    g1 = jnp.ones((out_channels,), jnp.float32)
    be1 = jnp.zeros((out_channels,), jnp.float32)
    w2 = 0.3 * jax.random.normal(k3, (out_channels, out_channels, k), jnp.float32)
    b2 = 0.1 * jax.random.normal(k4, (out_channels,), jnp.float32)
    g2 = jnp.ones((out_channels,), jnp.float32)
    be2 = jnp.zeros((out_channels,), jnp.float32)
    return (w1, b1, g1, be1), (w2, b2, g2, be2)


if __name__ == "__main__":
    N, C_IN, C_OUT, L = 2, 4, 8, 16
    FIRST_STRIDE = 1

    key = jax.random.PRNGKey(0)
    kx, kp = jax.random.split(key)
    x = jax.random.normal(kx, (N, C_IN, L), jnp.float32)
    params = _init_params(kp, C_IN, C_OUT)

    run = jax.jit(functools.partial(convolutional_block, first_stride=FIRST_STRIDE))
    out = jax.block_until_ready(run(x, params))

    ref_mixed = _reference_block_mixed(x, params, first_stride=FIRST_STRIDE)
    ref_f32 = _reference_block_f32(x, params, first_stride=FIRST_STRIDE)
    assert out.shape == ref_f32.shape == (N, C_OUT, L), (out.shape, ref_f32.shape)

    # Tight check vs a reference with the same mixed precision (bf16 MXU inputs, bf16-stored
    # intermediates, f32 acc/BN).  Tolerance allows 1-ulp bf16 tie-rounding differences between
    # the kernel's tap-matmul accumulation order and XLA's conv.
    np.testing.assert_allclose(np.asarray(out), np.asarray(ref_mixed), rtol=5e-3, atol=5e-3)
    # Coarse sanity band vs the pure-f32 PyTorch-style reference.
    np.testing.assert_allclose(np.asarray(out), np.asarray(ref_f32), rtol=1e-1, atol=1e-1)

    print("KERNEL_OK")
</pallas_src>

<mosaic_0001>
module attributes {stable_mosaic.version = 11 : i64} {
  func.func @_bn_relu_conv_stats_kernel(%arg0: i32, %arg1: memref<1x16x128xbf16, #tpu.memory_space<vmem>>, %arg2: memref<2x128xf32, #tpu.memory_space<vmem>>, %arg3: memref<3x128x128xbf16, #tpu.memory_space<vmem>>, %arg4: memref<1x16x128xbf16, #tpu.memory_space<vmem>>, %arg5: memref<1x2x128xf32, #tpu.memory_space<vmem>>, %arg6: memref<32x128xf32, #tpu.memory_space<vmem>>) attributes {dimension_semantics = [#tpu.dimension_semantics<parallel>], iteration_bounds = array<i64: 2>, scalar_prefetch = 0 : i64, scratch_operands = 1 : i64, tpu.core_type = #tpu.core_type<tc>, window_params = [{transform_indices = @transform_0, window_bounds = array<i64: 1, 16, 128>}, {pipeline_mode = #tpu.pipeline_mode<synchronous>, transform_indices = @transform_1, window_bounds = array<i64: 2, 128>}, {pipeline_mode = #tpu.pipeline_mode<synchronous>, transform_indices = @transform_2, window_bounds = array<i64: 3, 128, 128>}, {transform_indices = @transform_3, window_bounds = array<i64: 1, 16, 128>}, {transform_indices = @transform_4, window_bounds = array<i64: 1, 2, 128>}]} {
    %c0 = arith.constant 0 : index
    %c0_0 = arith.constant 0 : index
    %0 = vector.load %arg2[%c0, %c0_0] : memref<2x128xf32, #tpu.memory_space<vmem>>, vector<1x128xf32>
    %c1 = arith.constant 1 : index
    %c0_1 = arith.constant 0 : index
    %1 = vector.load %arg2[%c1, %c0_1] : memref<2x128xf32, #tpu.memory_space<vmem>>, vector<1x128xf32>
    %c0_2 = arith.constant 0 : index
    %c0_3 = arith.constant 0 : index
    %c0_4 = arith.constant 0 : index
    %2 = vector.load %arg1[%c0_2, %c0_3, %c0_4] : memref<1x16x128xbf16, #tpu.memory_space<vmem>>, vector<1x16x128xbf16>
    %3 = vector.shape_cast %2 : vector<1x16x128xbf16> to vector<16x128xbf16>
    %4 = arith.extf %3 : vector<16x128xbf16> to vector<16x128xf32>
    %5 = vector.broadcast %0 : vector<1x128xf32> to vector<16x128xf32>
    %6 = arith.mulf %4, %5 : vector<16x128xf32>
    %7 = vector.broadcast %1 : vector<1x128xf32> to vector<16x128xf32>
    %8 = arith.addf %6, %7 : vector<16x128xf32>
    %cst = arith.constant 0.000000e+00 : f32
    %9 = vector.broadcast %cst : f32 to vector<16x128xf32>
    %10 = arith.maximumf %8, %9 : vector<16x128xf32>
    %cst_5 = arith.constant 0.000000e+00 : f32
    %11 = vector.broadcast %cst_5 : f32 to vector<8x128xf32>
    %c0_6 = arith.constant 0 : index
    %c0_7 = arith.constant 0 : index
    %12 = vector.load %arg6[%c0_6, %c0_7] : memref<32x128xf32, #tpu.memory_space<vmem>>, vector<8x128xf32>
    tpu.vector_store %arg6[%c0_6, %c0_7], %11 {strides = array<i32>} : memref<32x128xf32, #tpu.memory_space<vmem>>, vector<8x128xf32>,
    %cst_8 = arith.constant 0.000000e+00 : f32
    %13 = vector.broadcast %cst_8 : f32 to vector<8x128xf32>
    %c24 = arith.constant 24 : index
    %c0_9 = arith.constant 0 : index
    %14 = vector.load %arg6[%c24, %c0_9] : memref<32x128xf32, #tpu.memory_space<vmem>>, vector<8x128xf32>
    tpu.vector_store %arg6[%c24, %c0_9], %13 {strides = array<i32>} : memref<32x128xf32, #tpu.memory_space<vmem>>, vector<8x128xf32>,
    %c8 = arith.constant 8 : index
    %c0_10 = arith.constant 0 : index
    %15 = vector.load %arg6[%c8, %c0_10] : memref<32x128xf32, #tpu.memory_space<vmem>>, vector<16x128xf32>
    tpu.vector_store %arg6[%c8, %c0_10], %10 {strides = array<i32>} : memref<32x128xf32, #tpu.memory_space<vmem>>, vector<16x128xf32>,
    %c7 = arith.constant 7 : index
    %c0_11 = arith.constant 0 : index
    %16 = vector.load %arg6[%c7, %c0_11] : memref<32x128xf32, #tpu.memory_space<vmem>>, vector<16x128xf32>
    %17 = arith.truncf %16 : vector<16x128xf32> to vector<16x128xbf16>
    %c0_12 = arith.constant 0 : index
    %c0_13 = arith.constant 0 : index
    %c0_14 = arith.constant 0 : index
    %18 = vector.load %arg3[%c0_12, %c0_13, %c0_14] : memref<3x128x128xbf16, #tpu.memory_space<vmem>>, vector<1x128x128xbf16>
    %19 = vector.shape_cast %18 : vector<1x128x128xbf16> to vector<128x128xbf16>
    %cst_15 = arith.constant dense<0.000000e+00> : vector<16x128xf32>
    %20 = tpu.matmul %17, %19, %cst_15 {dimension_numbers = #tpu.dot_dimension_numbers<[1], [0], [0], [1], [0, 0, 1, 1], [], []>} : vector<16x128xbf16>, vector<128x128xbf16>, vector<16x128xf32> -> vector<16x128xf32>
    %c8_16 = arith.constant 8 : index
    %c0_17 = arith.constant 0 : index
    %21 = vector.load %arg6[%c8_16, %c0_17] : memref<32x128xf32, #tpu.memory_space<vmem>>, vector<16x128xf32>
    %22 = arith.truncf %21 : vector<16x128xf32> to vector<16x128xbf16>
    %c1_18 = arith.constant 1 : index
    %c0_19 = arith.constant 0 : index
    %c0_20 = arith.constant 0 : index
    %23 = vector.load %arg3[%c1_18, %c0_19, %c0_20] : memref<3x128x128xbf16, #tpu.memory_space<vmem>>, vector<1x128x128xbf16>
    %24 = vector.shape_cast %23 : vector<1x128x128xbf16> to vector<128x128xbf16>
    %cst_21 = arith.constant dense<0.000000e+00> : vector<16x128xf32>
    %25 = tpu.matmul %22, %24, %cst_21 {dimension_numbers = #tpu.dot_dimension_numbers<[1], [0], [0], [1], [0, 0, 1, 1], [], []>} : vector<16x128xbf16>, vector<128x128xbf16>, vector<16x128xf32> -> vector<16x128xf32>
    %26 = arith.addf %20, %25 : vector<16x128xf32>
    %c9 = arith.constant 9 : index
    %c0_22 = arith.constant 0 : index
    %27 = vector.load %arg6[%c9, %c0_22] : memref<32x128xf32, #tpu.memory_space<vmem>>, vector<16x128xf32>
    %28 = arith.truncf %27 : vector<16x128xf32> to vector<16x128xbf16>
    %c2 = arith.constant 2 : index
    %c0_23 = arith.constant 0 : index
    %c0_24 = arith.constant 0 : index
    %29 = vector.load %arg3[%c2, %c0_23, %c0_24] : memref<3x128x128xbf16, #tpu.memory_space<vmem>>, vector<1x128x128xbf16>
    %30 = vector.shape_cast %29 : vector<1x128x128xbf16> to vector<128x128xbf16>
    %cst_25 = arith.constant dense<0.000000e+00> : vector<16x128xf32>
    %31 = tpu.matmul %28, %30, %cst_25 {dimension_numbers = #tpu.dot_dimension_numbers<[1], [0], [0], [1], [0, 0, 1, 1], [], []>} : vector<16x128xbf16>, vector<128x128xbf16>, vector<16x128xf32> -> vector<16x128xf32>
    %32 = arith.addf %26, %31 : vector<16x128xf32>
    %33 = arith.truncf %32 : vector<16x128xf32> to vector<16x128xbf16>
    %c0_26 = arith.constant 0 : index
    %c0_27 = arith.constant 0 : index
    %c0_28 = arith.constant 0 : index
    %34 = vector.load %arg4[%c0_26, %c0_27, %c0_28] : memref<1x16x128xbf16, #tpu.memory_space<vmem>>, vector<1x16x128xbf16>
    %35 = vector.shape_cast %34 : vector<1x16x128xbf16> to vector<16x128xbf16>
    %36 = vector.shape_cast %33 : vector<16x128xbf16> to vector<1x16x128xbf16>
    tpu.vector_store %arg4[%c0_26, %c0_27, %c0_28], %36 {strides = array<i32>} : memref<1x16x128xbf16, #tpu.memory_space<vmem>>, vector<1x16x128xbf16>,
    %cst_29 = arith.constant dense<0.000000e+00> : vector<128xf32>
    %37 = vector.multi_reduction <add>, %32, %cst_29 [0] : vector<16x128xf32> to vector<128xf32>
    %38 = vector.shape_cast %37 : vector<128xf32> to vector<1x128xf32>
    %cst_30 = arith.constant 6.250000e-02 : f32
    %39 = vector.broadcast %cst_30 : f32 to vector<1x128xf32>
    %40 = arith.mulf %38, %39 : vector<1x128xf32>
    %41 = vector.broadcast %40 : vector<1x128xf32> to vector<16x128xf32>
    %42 = arith.subf %32, %41 : vector<16x128xf32>
    %43 = arith.mulf %42, %42 : vector<16x128xf32>
    %cst_31 = arith.constant dense<0.000000e+00> : vector<128xf32>
    %44 = vector.multi_reduction <add>, %43, %cst_31 [0] : vector<16x128xf32> to vector<128xf32>
    %45 = vector.shape_cast %44 : vector<128xf32> to vector<1x128xf32>
    %46 = tpu.concatenate %38, %45 in 0 : vector<1x128xf32>, vector<1x128xf32> -> vector<2x128xf32>
    %c0_32 = arith.constant 0 : index
    %c0_33 = arith.constant 0 : index
    %c0_34 = arith.constant 0 : index
    %47 = vector.load %arg5[%c0_32, %c0_33, %c0_34] : memref<1x2x128xf32, #tpu.memory_space<vmem>>, vector<1x2x128xf32>
    %48 = vector.shape_cast %47 : vector<1x2x128xf32> to vector<2x128xf32>
    %49 = vector.shape_cast %46 : vector<2x128xf32> to vector<1x2x128xf32>
    tpu.vector_store %arg5[%c0_32, %c0_33, %c0_34], %49 {strides = array<i32>} : memref<1x2x128xf32, #tpu.memory_space<vmem>>, vector<1x2x128xf32>,
    return
  }
  func.func @transform_0(%arg0: i32) -> (i32, i32, i32) {
    %c0_i32 = arith.constant 0 : i32
    %c0_i32_0 = arith.constant 0 : i32
    %c0_i32_1 = arith.constant 0 : i32
    return %arg0, %c0_i32, %c0_i32_0 : i32, i32, i32
  }
  func.func @transform_1(%arg0: i32) -> (i32, i32) {
    %c0_i32 = arith.constant 0 : i32
    %c0_i32_0 = arith.constant 0 : i32
    %c0_i32_1 = arith.constant 0 : i32
    return %c0_i32, %c0_i32_0 : i32, i32
  }
  func.func @transform_2(%arg0: i32) -> (i32, i32, i32) {
    %c0_i32 = arith.constant 0 : i32
    %c0_i32_0 = arith.constant 0 : i32
    %c0_i32_1 = arith.constant 0 : i32
    %c0_i32_2 = arith.constant 0 : i32
    return %c0_i32, %c0_i32_0, %c0_i32_1 : i32, i32, i32
  }
  func.func @transform_3(%arg0: i32) -> (i32, i32, i32) {
    %c0_i32 = arith.constant 0 : i32
    %c0_i32_0 = arith.constant 0 : i32
    %c0_i32_1 = arith.constant 0 : i32
    return %arg0, %c0_i32, %c0_i32_0 : i32, i32, i32
  }
  func.func @transform_4(%arg0: i32) -> (i32, i32, i32) {
    %c0_i32 = arith.constant 0 : i32
    %c0_i32_0 = arith.constant 0 : i32
    %c0_i32_1 = arith.constant 0 : i32
    return %arg0, %c0_i32, %c0_i32_0 : i32, i32, i32
  }
}

module attributes {stable_mosaic.version = 11 : i64} {
  func.func @_bn_relu_kernel(%arg0: i32, %arg1: memref<1x16x128xbf16, #tpu.memory_space<vmem>>, %arg2: memref<2x128xf32, #tpu.memory_space<vmem>>, %arg3: memref<1x16x128xf32, #tpu.memory_space<vmem>>) attributes {dimension_semantics = [#tpu.dimension_semantics<parallel>], iteration_bounds = array<i64: 2>, scalar_prefetch = 0 : i64, scratch_operands = 0 : i64, tpu.core_type = #tpu.core_type<tc>, window_params = [{transform_indices = @transform_0, window_bounds = array<i64: 1, 16, 128>}, {pipeline_mode = #tpu.pipeline_mode<synchronous>, transform_indices = @transform_1, window_bounds = array<i64: 2, 128>}, {transform_indices = @transform_2, window_bounds = array<i64: 1, 16, 128>}]} {
    %c0 = arith.constant 0 : index
    %c0_0 = arith.constant 0 : index
    %c0_1 = arith.constant 0 : index
    %0 = vector.load %arg1[%c0, %c0_0, %c0_1] : memref<1x16x128xbf16, #tpu.memory_space<vmem>>, vector<1x16x128xbf16>
    %1 = vector.shape_cast %0 : vector<1x16x128xbf16> to vector<16x128xbf16>
    %c0_2 = arith.constant 0 : index
    %c0_3 = arith.constant 0 : index
    %2 = vector.load %arg2[%c0_2, %c0_3] : memref<2x128xf32, #tpu.memory_space<vmem>>, vector<1x128xf32>
    %3 = arith.extf %1 : vector<16x128xbf16> to vector<16x128xf32>
    %4 = vector.broadcast %2 : vector<1x128xf32> to vector<16x128xf32>
    %5 = arith.mulf %3, %4 : vector<16x128xf32>
    %c1 = arith.constant 1 : index
    %c0_4 = arith.constant 0 : index
    %6 = vector.load %arg2[%c1, %c0_4] : memref<2x128xf32, #tpu.memory_space<vmem>>, vector<1x128xf32>
    %7 = vector.broadcast %6 : vector<1x128xf32> to vector<16x128xf32>
    %8 = arith.addf %5, %7 : vector<16x128xf32>
    %cst = arith.constant 0.000000e+00 : f32
    %9 = vector.broadcast %cst : f32 to vector<16x128xf32>
    %10 = arith.maximumf %8, %9 : vector<16x128xf32>
    %c0_5 = arith.constant 0 : index
    %c0_6 = arith.constant 0 : index
    %c0_7 = arith.constant 0 : index
    %11 = vector.load %arg3[%c0_5, %c0_6, %c0_7] : memref<1x16x128xf32, #tpu.memory_space<vmem>>, vector<1x16x128xf32>
    %12 = vector.shape_cast %11 : vector<1x16x128xf32> to vector<16x128xf32>
    %13 = vector.shape_cast %10 : vector<16x128xf32> to vector<1x16x128xf32>
    tpu.vector_store %arg3[%c0_5, %c0_6, %c0_7], %13 {strides = array<i32>} : memref<1x16x128xf32, #tpu.memory_space<vmem>>, vector<1x16x128xf32>,
    return
  }
  func.func @transform_0(%arg0: i32) -> (i32, i32, i32) {
    %c0_i32 = arith.constant 0 : i32
    %c0_i32_0 = arith.constant 0 : i32
    %c0_i32_1 = arith.constant 0 : i32
    return %arg0, %c0_i32, %c0_i32_0 : i32, i32, i32
  }
  func.func @transform_1(%arg0: i32) -> (i32, i32) {
    %c0_i32 = arith.constant 0 : i32
    %c0_i32_0 = arith.constant 0 : i32
    %c0_i32_1 = arith.constant 0 : i32
    return %c0_i32, %c0_i32_0 : i32, i32
  }
  func.func @transform_2(%arg0: i32) -> (i32, i32, i32) {
    %c0_i32 = arith.constant 0 : i32
    %c0_i32_0 = arith.constant 0 : i32
    %c0_i32_1 = arith.constant 0 : i32
    return %arg0, %c0_i32, %c0_i32_0 : i32, i32, i32
  }
}

module attributes {stable_mosaic.version = 11 : i64} {
  func.func @_conv_stats_kernel(%arg0: i32, %arg1: memref<1x18x128xbf16, #tpu.memory_space<vmem>>, %arg2: memref<3x128x128xbf16, #tpu.memory_space<vmem>>, %arg3: memref<1x16x128xbf16, #tpu.memory_space<vmem>>, %arg4: memref<1x2x128xf32, #tpu.memory_space<vmem>>) attributes {dimension_semantics = [#tpu.dimension_semantics<parallel>], iteration_bounds = array<i64: 2>, scalar_prefetch = 0 : i64, scratch_operands = 0 : i64, tpu.core_type = #tpu.core_type<tc>, window_params = [{transform_indices = @transform_0, window_bounds = array<i64: 1, 18, 128>}, {pipeline_mode = #tpu.pipeline_mode<synchronous>, transform_indices = @transform_1, window_bounds = array<i64: 3, 128, 128>}, {transform_indices = @transform_2, window_bounds = array<i64: 1, 16, 128>}, {transform_indices = @transform_3, window_bounds = array<i64: 1, 2, 128>}]} {
    %c0 = arith.constant 0 : index
    %c0_0 = arith.constant 0 : index
    %c0_1 = arith.constant 0 : index
    %0 = vector.load %arg1[%c0, %c0_0, %c0_1] : memref<1x18x128xbf16, #tpu.memory_space<vmem>>, vector<1x16x128xbf16>
    %1 = vector.shape_cast %0 : vector<1x16x128xbf16> to vector<16x128xbf16>
    %c0_2 = arith.constant 0 : index
    %c1 = arith.constant 1 : index
    %c0_3 = arith.constant 0 : index
    %2 = vector.load %arg1[%c0_2, %c1, %c0_3] : memref<1x18x128xbf16, #tpu.memory_space<vmem>>, vector<1x16x128xbf16>
    %3 = vector.shape_cast %2 : vector<1x16x128xbf16> to vector<16x128xbf16>
    %c0_4 = arith.constant 0 : index
    %c2 = arith.constant 2 : index
    %c0_5 = arith.constant 0 : index
    %4 = vector.load %arg1[%c0_4, %c2, %c0_5] : memref<1x18x128xbf16, #tpu.memory_space<vmem>>, vector<1x16x128xbf16>
    %5 = vector.shape_cast %4 : vector<1x16x128xbf16> to vector<16x128xbf16>
    %c0_6 = arith.constant 0 : index
    %c0_7 = arith.constant 0 : index
    %c0_8 = arith.constant 0 : index
    %6 = vector.load %arg2[%c0_6, %c0_7, %c0_8] : memref<3x128x128xbf16, #tpu.memory_space<vmem>>, vector<1x128x128xbf16>
    %7 = vector.shape_cast %6 : vector<1x128x128xbf16> to vector<128x128xbf16>
    %cst = arith.constant dense<0.000000e+00> : vector<16x128xf32>
    %8 = tpu.matmul %1, %7, %cst {dimension_numbers = #tpu.dot_dimension_numbers<[1], [0], [0], [1], [0, 0, 1, 1], [], []>} : vector<16x128xbf16>, vector<128x128xbf16>, vector<16x128xf32> -> vector<16x128xf32>
    %c1_9 = arith.constant 1 : index
    %c0_10 = arith.constant 0 : index
    %c0_11 = arith.constant 0 : index
    %9 = vector.load %arg2[%c1_9, %c0_10, %c0_11] : memref<3x128x128xbf16, #tpu.memory_space<vmem>>, vector<1x128x128xbf16>
    %10 = vector.shape_cast %9 : vector<1x128x128xbf16> to vector<128x128xbf16>
    %cst_12 = arith.constant dense<0.000000e+00> : vector<16x128xf32>
    %11 = tpu.matmul %3, %10, %cst_12 {dimension_numbers = #tpu.dot_dimension_numbers<[1], [0], [0], [1], [0, 0, 1, 1], [], []>} : vector<16x128xbf16>, vector<128x128xbf16>, vector<16x128xf32> -> vector<16x128xf32>
    %12 = arith.addf %8, %11 : vector<16x128xf32>
    %c2_13 = arith.constant 2 : index
    %c0_14 = arith.constant 0 : index
    %c0_15 = arith.constant 0 : index
    %13 = vector.load %arg2[%c2_13, %c0_14, %c0_15] : memref<3x128x128xbf16, #tpu.memory_space<vmem>>, vector<1x128x128xbf16>
    %14 = vector.shape_cast %13 : vector<1x128x128xbf16> to vector<128x128xbf16>
    %cst_16 = arith.constant dense<0.000000e+00> : vector<16x128xf32>
    %15 = tpu.matmul %5, %14, %cst_16 {dimension_numbers = #tpu.dot_dimension_numbers<[1], [0], [0], [1], [0, 0, 1, 1], [], []>} : vector<16x128xbf16>, vector<128x128xbf16>, vector<16x128xf32> -> vector<16x128xf32>
    %16 = arith.addf %12, %15 : vector<16x128xf32>
    %17 = arith.truncf %16 : vector<16x128xf32> to vector<16x128xbf16>
    %c0_17 = arith.constant 0 : index
    %c0_18 = arith.constant 0 : index
    %c0_19 = arith.constant 0 : index
    %18 = vector.load %arg3[%c0_17, %c0_18, %c0_19] : memref<1x16x128xbf16, #tpu.memory_space<vmem>>, vector<1x16x128xbf16>
    %19 = vector.shape_cast %18 : vector<1x16x128xbf16> to vector<16x128xbf16>
    %20 = vector.shape_cast %17 : vector<16x128xbf16> to vector<1x16x128xbf16>
    tpu.vector_store %arg3[%c0_17, %c0_18, %c0_19], %20 {strides = array<i32>} : memref<1x16x128xbf16, #tpu.memory_space<vmem>>, vector<1x16x128xbf16>,
    %cst_20 = arith.constant dense<0.000000e+00> : vector<128xf32>
    %21 = vector.multi_reduction <add>, %16, %cst_20 [0] : vector<16x128xf32> to vector<128xf32>
    %22 = vector.shape_cast %21 : vector<128xf32> to vector<1x128xf32>
    %cst_21 = arith.constant 6.250000e-02 : f32
    %23 = vector.broadcast %cst_21 : f32 to vector<1x128xf32>
    %24 = arith.mulf %22, %23 : vector<1x128xf32>
    %25 = vector.broadcast %24 : vector<1x128xf32> to vector<16x128xf32>
    %26 = arith.subf %16, %25 : vector<16x128xf32>
    %27 = arith.mulf %26, %26 : vector<16x128xf32>
    %cst_22 = arith.constant dense<0.000000e+00> : vector<128xf32>
    %28 = vector.multi_reduction <add>, %27, %cst_22 [0] : vector<16x128xf32> to vector<128xf32>
    %29 = vector.shape_cast %28 : vector<128xf32> to vector<1x128xf32>
    %30 = tpu.concatenate %22, %29 in 0 : vector<1x128xf32>, vector<1x128xf32> -> vector<2x128xf32>
    %c0_23 = arith.constant 0 : index
    %c0_24 = arith.constant 0 : index
    %c0_25 = arith.constant 0 : index
    %31 = vector.load %arg4[%c0_23, %c0_24, %c0_25] : memref<1x2x128xf32, #tpu.memory_space<vmem>>, vector<1x2x128xf32>
    %32 = vector.shape_cast %31 : vector<1x2x128xf32> to vector<2x128xf32>
    %33 = vector.shape_cast %30 : vector<2x128xf32> to vector<1x2x128xf32>
    tpu.vector_store %arg4[%c0_23, %c0_24, %c0_25], %33 {strides = array<i32>} : memref<1x2x128xf32, #tpu.memory_space<vmem>>, vector<1x2x128xf32>,
    return
  }
  func.func @transform_0(%arg0: i32) -> (i32, i32, i32) {
    %c0_i32 = arith.constant 0 : i32
    %c0_i32_0 = arith.constant 0 : i32
    %c0_i32_1 = arith.constant 0 : i32
    return %arg0, %c0_i32, %c0_i32_0 : i32, i32, i32
  }
  func.func @transform_1(%arg0: i32) -> (i32, i32, i32) {
    %c0_i32 = arith.constant 0 : i32
    %c0_i32_0 = arith.constant 0 : i32
    %c0_i32_1 = arith.constant 0 : i32
    %c0_i32_2 = arith.constant 0 : i32
    return %c0_i32, %c0_i32_0, %c0_i32_1 : i32, i32, i32
  }
  func.func @transform_2(%arg0: i32) -> (i32, i32, i32) {
    %c0_i32 = arith.constant 0 : i32
    %c0_i32_0 = arith.constant 0 : i32
    %c0_i32_1 = arith.constant 0 : i32
    return %arg0, %c0_i32, %c0_i32_0 : i32, i32, i32
  }
  func.func @transform_3(%arg0: i32) -> (i32, i32, i32) {
    %c0_i32 = arith.constant 0 : i32
    %c0_i32_0 = arith.constant 0 : i32
    %c0_i32_1 = arith.constant 0 : i32
    return %arg0, %c0_i32, %c0_i32_0 : i32, i32, i32
  }
}

</mosaic_0001>

<llo_original>
// kernel: convolutional_block.5
$region0: #{convolutional_block.5}
  #allocation0 [shape = 'u32[]', space=smem, size = 0x4, offset = 0x4, fixed_abs, tag = 'smem constant byte address 0x4 - core index']
  #allocation1 [shape = 'u32[144,128]{1,0:T(1,128)}', space=vmem, size = 0x12000, scoped, tag = 'internal scratch']
  %s0 = inlined_call_operand.vmem [shape: bf16[2,16,128], index: 0, kind: input, shape index: {}]
  %s1 = inlined_call_operand.vmem [shape: f32[2,128], index: 1, kind: input, shape index: {}]
  %s2 = inlined_call_operand.vmem [shape: f32[2,16,128], index: 2, kind: output, shape index: {}]
  %s3 = sld [smem:[#allocation0]]
  $region41: #{convolutional_block.5} parent=0
    _
  %s5 = ssub.s32 1, %s3
  %s6 = scalar_select 0, %s5, %s3
  loop: start=0, step=1, limit=4
  $region2: #{convolutional_block.5} parent=0 // loop_pre_header
    _
  $region3: #{convolutional_block.5} parent=0 // loop_header
    %s8 = sphi 0, %s12
    %p9 = scmp.ge.s32.totalorder %s8, 4
    %s18 = sphi 0, %s20
    %s21 = sphi 0, %s18
    %s22 = sphi 0, %s21
    %s38 = sphi 0, %s22
    %s42 = sphi 0, %s42
    %s44 = sphi 0, %s42
    %s45 = sphi 0, %s44
    %s59 = sphi 0, %s45
    %s65 = sphi 0, %s67
    %s68 = sphi 0, %s65
    %s69 = sphi 0, %s68
    %s85 = sphi 0, %s69
  $region4: #{convolutional_block.5} parent=0 // loop_header_branch
    %11 = sbr.rel (%p9) target = $region8
  $region5: #{convolutional_block.5} parent=0 // loop_body
    %s13 = ssub.s32 %s8, 1
    %s14 = ssub.s32 %s8, 2
    %s15 = sadd.s32 %s8, 1
    %s16 = ssub.s32 %s8, %s15
    %p17 = scmp.eq.s32.totalorder %s16, 0
    %s19 = sadd.s32 %s18, 1
    %s20 = scalar_select %p17, %s18, %s19
    %p23 = pneg %p17
    %p24 = scmp.eq.s32.totalorder %s8, 1
    %p25 = por %p23, %p24
    %p26 = scmp.ne.s32.totalorder %s18, %s21
    %p27 = scmp.eq.s32.totalorder %s8, 0
    %p28 = por %p26, %p27
    %p29 = scmp.ne.s32.totalorder %s18, %s21
    %p30 = scmp.eq.s32.totalorder %s13, 1
    %p31 = por %p29, %p30
    %p32 = scmp.ne.s32.totalorder %s21, %s22
    %p33 = scmp.eq.s32.totalorder %s13, 0
    %p34 = por %p32, %p33
    %p35 = scmp.ne.s32.totalorder %s21, %s22
    %p36 = scmp.eq.s32.totalorder %s14, 1
    %p37 = por %p35, %p36
    %p39 = scmp.ne.s32.totalorder %s22, %s38
    %p40 = scmp.eq.s32.totalorder %s14, 0
    %p41 = por %p39, %p40
    %s43 = sadd.s32 %s42, 1
    %p46 = scmp.eq.s32.totalorder %s8, 1
    %p47 = scmp.ne.s32.totalorder %s42, %s44
    %p48 = scmp.eq.s32.totalorder %s8, 0
    %p49 = por %p47, %p48
    %p50 = scmp.ne.s32.totalorder %s42, %s44
    %p51 = scmp.eq.s32.totalorder %s13, 1
    %p52 = por %p50, %p51
    %p53 = scmp.ne.s32.totalorder %s44, %s45
    %p54 = scmp.eq.s32.totalorder %s13, 0
    %p55 = por %p53, %p54
    %p56 = scmp.ne.s32.totalorder %s44, %s45
    %p57 = scmp.eq.s32.totalorder %s14, 1
    %p58 = por %p56, %p57
    %p60 = scmp.ne.s32.totalorder %s45, %s59
    %p61 = scmp.eq.s32.totalorder %s14, 0
    %p62 = por %p60, %p61
    %s63 = ssub.s32 %s8, %s15
    %p64 = scmp.eq.s32.totalorder %s63, 0
    %s66 = sadd.s32 %s65, 1
    %s67 = scalar_select %p64, %s65, %s66
    %p70 = pneg %p64
    %p71 = scmp.eq.s32.totalorder %s8, 1
    %p72 = por %p70, %p71
    %p73 = scmp.ne.s32.totalorder %s65, %s68
    %p74 = scmp.eq.s32.totalorder %s8, 0
    %p75 = por %p73, %p74
    %p76 = scmp.ne.s32.totalorder %s65, %s68
    %p77 = scmp.eq.s32.totalorder %s13, 1
    %p78 = por %p76, %p77
    %p79 = scmp.ne.s32.totalorder %s68, %s69
    %p80 = scmp.eq.s32.totalorder %s13, 0
    %p81 = por %p79, %p80
    %p82 = scmp.ne.s32.totalorder %s68, %s69
    %p83 = scmp.eq.s32.totalorder %s14, 1
    %p84 = por %p82, %p83
    %p86 = scmp.ne.s32.totalorder %s69, %s85
    %p87 = scmp.eq.s32.totalorder %s14, 0
    %p88 = por %p86, %p87
    %p89 = scmp.le.s32.totalorder 1, %s8
    %p90 = scmp.lt.s32.totalorder %s8, 3
    %p91 = pnand %p89, %p90
    %p92 = pneg %p91
    // Predicated region
    $region9: #{convolutional_block.5} parent=5 // pred_check
      _
    $region10: #{convolutional_block.5} parent=5 // pred_check_branch
      %94 = sbr.rel (%p91) target = $region12
    $region11: #{convolutional_block.5} parent=5 // pred_region
      %s95 = ssub.s32 %s8, 1
      // Predicated region
      $region13: #{convolutional_block.5} parent=11 // pred_check
        %p96 = pneg %p55
      $region14: #{convolutional_block.5} parent=11 // pred_check_branch
        %98 = sbr.rel (%p96) target = $region16
      $region15: #{convolutional_block.5} parent=11 // pred_region
        _
      $region16: #{convolutional_block.5} parent=11 // pred_fallthru
        _
    $region12: #{convolutional_block.5} parent=5 // pred_fallthru
      _
    %p99 = scmp.lt.s32.totalorder %s8, 2
    // Predicated region
    $region17: #{convolutional_block.5} parent=5 // pred_check
      %p100 = pneg %p99
    $region18: #{convolutional_block.5} parent=5 // pred_check_branch
      %102 = sbr.rel (%p100) target = $region20
    $region19: #{convolutional_block.5} parent=5 // pred_region
      // Predicated region
      $region21: #{convolutional_block.5} parent=19 // pred_check
        %p103 = pneg %p28
      $region22: #{convolutional_block.5} parent=19 // pred_check_branch
        %105 = sbr.rel (%p103) target = $region24
      $region23: #{convolutional_block.5} parent=19 // pred_region
        %p106 = scmp.lt.s32.totalorder %s8, 1
        %s107 = scalar_select %p106, %s8, 1
        %s108 = smul.addr %s107, 2
        %s109 = smul.addr %s108, 4
        %s110 = scalar_lea.vmem %s0, %s109
      $region24: #{convolutional_block.5} parent=19 // pred_fallthru
        _
    $region20: #{convolutional_block.5} parent=5 // pred_fallthru
      _
    %p111 = scmp.le.s32.totalorder 1, %s8
    %p112 = scmp.lt.s32.totalorder %s8, 3
    %p113 = pnand %p111, %p112
    %p114 = pneg %p113
    // Predicated region
    $region25: #{convolutional_block.5} parent=5 // pred_check
      _
    $region26: #{convolutional_block.5} parent=5 // pred_check_branch
      %116 = sbr.rel (%p113) target = $region28
    $region27: #{convolutional_block.5} parent=5 // pred_region
      %s117 = ssub.s32 %s8, 1
      %p118 = scmp.lt.s32.totalorder %s13, 1
      %s119 = scalar_select %p118, %s13, 1
      %s120 = smul.addr %s119, 2
      %s121 = smul.addr %s120, 4
      %s122 = scalar_lea.vmem %s0, %s121
      %p123 = pneg %p34
      %p124 = pneg %p31
      %p125 = pneg %p55
      %p126 = pneg %p52
      %p127 = pneg %p81
      %p128 = pneg %p78
      %p129 = scmp.lt.s32.totalorder %s13, 1
      %s130 = scalar_select %p129, %s13, 1
      %s131 = smul.addr %s130, 2
      %s132 = smul.addr %s131, 8
      %s133 = scalar_lea.vmem %s2, %s132
      %p134 = scmp.lt.s32.totalorder %s13, 1
      %s135 = scalar_select %p134, %s13, 1
      %s136 = smul.addr %s135, 2
      %s137 = smul.addr %s136, 4
      %s138 = scalar_lea.vmem %s0, %s137
      %p139 = scmp.lt.s32.totalorder %s13, 1
      %s140 = scalar_select %p139, %s13, 1
      %s141 = smul.addr %s140, 2
      %s142 = smul.addr %s141, 8
      %s143 = scalar_lea.vmem %s2, %s142
      %v144 = vld [vmem:[%s138] sm:$0xf]
      %v145 = vld [vmem:[%s138 + $0x4] sm:$0xf]
      %v146 = vld [vmem:[%s1] sm:$0x1]
      %v147 = vunpack.c.l.bf16 %v144
      %v148 = vunpack.c.l.bf16 %v145
      %v149 = vlaneseq
      %v150 = vshrl.u32 %v149, 7
      %v151 = vsub.s32 0, %v150
      %v152 = vrot.slane %v146, %v151
      %v153 = vmul.f32 %v147, %v152
      %v154 = vmul.f32 %v148, %v152
      %v155 = vld [vmem:[%s1 + $0x1] sm:$0x1]
      %v156 = vlaneseq
      %v157 = vshrl.u32 %v156, 7
      %v158 = vsub.s32 0, %v157
      %v159 = vrot.slane %v155, %v158
      %v160 = vadd.f32 %v153, %v159
      %v161 = vadd.f32 %v154, %v159
      %v162 = vmax.f32 %v160, 0.0
      %v163 = vmax.f32 %v161, 0.0
      %164 = vst [vmem:[%s143] sm:$0xff] %v162
      %165 = vst [vmem:[%s143 + $0x8] sm:$0xff] %v163
      %p166 = scmp.lt.s32.totalorder %s13, 1
      %s167 = scalar_select %p166, %s13, 1
      %s168 = smul.addr %s167, 2
      %s169 = smul.addr %s168, 8
      %s170 = scalar_lea.vmem %s2, %s169
      // Predicated region
      $region29: #{convolutional_block.5} parent=27 // pred_check
        %p171 = pneg %p78
      $region30: #{convolutional_block.5} parent=27 // pred_check_branch
        %173 = sbr.rel (%p171) target = $region32
      $region31: #{convolutional_block.5} parent=27 // pred_region
        _
      $region32: #{convolutional_block.5} parent=27 // pred_fallthru
        _
    $region28: #{convolutional_block.5} parent=5 // pred_fallthru
      _
    %p174 = scmp.le.s32.totalorder 2, %s8
    // Predicated region
    $region33: #{convolutional_block.5} parent=5 // pred_check
      %p175 = pneg %p174
    $region34: #{convolutional_block.5} parent=5 // pred_check_branch
      %177 = sbr.rel (%p175) target = $region36
    $region35: #{convolutional_block.5} parent=5 // pred_region
      %s178 = ssub.s32 %s8, 2
      // Predicated region
      $region37: #{convolutional_block.5} parent=35 // pred_check
        %p179 = pneg %p84
      $region38: #{convolutional_block.5} parent=35 // pred_check_branch
        %181 = sbr.rel (%p179) target = $region40
      $region39: #{convolutional_block.5} parent=35 // pred_region
        %p182 = scmp.lt.s32.totalorder %s14, 1
        %s183 = scalar_select %p182, %s14, 1
        %s184 = smul.addr %s183, 2
        %s185 = smul.addr %s184, 8
        %s186 = scalar_lea.vmem %s2, %s185
      $region40: #{convolutional_block.5} parent=35 // pred_fallthru
        _
    $region36: #{convolutional_block.5} parent=5 // pred_fallthru
      _
  $region6: #{convolutional_block.5} parent=0 // loop_footer
    %s12 = sadd.s32 1, %s8
  $region7: #{convolutional_block.5} parent=0 // loop_footer_branch
    %7 = sbr.rel target = $region3
  $region8: #{convolutional_block.5} parent=0 // loop_exit
    _

// kernel: convolutional_block.4
$region0: #{convolutional_block.4}
  #allocation0 [shape = 'u32[]', space=smem, size = 0x4, offset = 0x4, fixed_abs, tag = 'smem constant byte address 0x4 - core index']
  #allocation1 [shape = 'u32[144,128]{1,0:T(1,128)}', space=vmem, size = 0x12000, scoped, tag = 'internal scratch']
  #allocation2 [shape = 'f32[32,128]{1,0:T(8,128)}', space=vmem, size = 0x4000, scoped, tag = 'scratch operand']
  %s0 = inlined_call_operand.vmem [shape: bf16[2,16,128], index: 0, kind: input, shape index: {}]
  %s1 = inlined_call_operand.vmem [shape: f32[2,128], index: 1, kind: input, shape index: {}]
  %s2 = inlined_call_operand.vmem [shape: bf16[3,128,128], index: 2, kind: input, shape index: {}]
  %s3 = inlined_call_operand.vmem [shape: bf16[2,16,128], index: 3, kind: output, shape index: {0}]
  %s4 = inlined_call_operand.vmem [shape: f32[2,2,128], index: 4, kind: output, shape index: {1}]
  %5 = xla_tuple %s3, %s4
  %s6 = sld [smem:[#allocation0]]
  $region53: #{convolutional_block.4} parent=0
    _
  %s8 = ssub.s32 1, %s6
  %s9 = scalar_select 0, %s8, %s6
  loop: start=0, step=1, limit=4
  $region2: #{convolutional_block.4} parent=0 // loop_pre_header
    _
  $region3: #{convolutional_block.4} parent=0 // loop_header
    %s11 = sphi 0, %s15
    %p12 = scmp.ge.s32.totalorder %s11, 4
    %s21 = sphi 0, %s23
    %s24 = sphi 0, %s21
    %s25 = sphi 0, %s24
    %s41 = sphi 0, %s25
    %s45 = sphi 0, %s45
    %s47 = sphi 0, %s45
    %s48 = sphi 0, %s47
    %s62 = sphi 0, %s48
    %s66 = sphi 0, %s66
    %s68 = sphi 0, %s66
    %s69 = sphi 0, %s68
    %s83 = sphi 0, %s69
    %s89 = sphi 0, %s91
    %s92 = sphi 0, %s89
    %s93 = sphi 0, %s92
    %s109 = sphi 0, %s93
    %s115 = sphi 0, %s117
    %s118 = sphi 0, %s115
    %s119 = sphi 0, %s118
    %s135 = sphi 0, %s119
  $region4: #{convolutional_block.4} parent=0 // loop_header_branch
    %14 = sbr.rel (%p12) target = $region8
  $region5: #{convolutional_block.4} parent=0 // loop_body
    %s16 = ssub.s32 %s11, 1
    %s17 = ssub.s32 %s11, 2
    %s18 = sadd.s32 %s11, 1
    %s19 = ssub.s32 %s11, %s18
    %p20 = scmp.eq.s32.totalorder %s19, 0
    %s22 = sadd.s32 %s21, 1
    %s23 = scalar_select %p20, %s21, %s22
    %p26 = pneg %p20
    %p27 = scmp.eq.s32.totalorder %s11, 1
    %p28 = por %p26, %p27
    %p29 = scmp.ne.s32.totalorder %s21, %s24
    %p30 = scmp.eq.s32.totalorder %s11, 0
    %p31 = por %p29, %p30
    %p32 = scmp.ne.s32.totalorder %s21, %s24
    %p33 = scmp.eq.s32.totalorder %s16, 1
    %p34 = por %p32, %p33
    %p35 = scmp.ne.s32.totalorder %s24, %s25
    %p36 = scmp.eq.s32.totalorder %s16, 0
    %p37 = por %p35, %p36
    %p38 = scmp.ne.s32.totalorder %s24, %s25
    %p39 = scmp.eq.s32.totalorder %s17, 1
    %p40 = por %p38, %p39
    %p42 = scmp.ne.s32.totalorder %s25, %s41
    %p43 = scmp.eq.s32.totalorder %s17, 0
    %p44 = por %p42, %p43
    %s46 = sadd.s32 %s45, 1
    %p49 = scmp.eq.s32.totalorder %s11, 1
    %p50 = scmp.ne.s32.totalorder %s45, %s47
    %p51 = scmp.eq.s32.totalorder %s11, 0
    %p52 = por %p50, %p51
    %p53 = scmp.ne.s32.totalorder %s45, %s47
    %p54 = scmp.eq.s32.totalorder %s16, 1
    %p55 = por %p53, %p54
    %p56 = scmp.ne.s32.totalorder %s47, %s48
    %p57 = scmp.eq.s32.totalorder %s16, 0
    %p58 = por %p56, %p57
    %p59 = scmp.ne.s32.totalorder %s47, %s48
    %p60 = scmp.eq.s32.totalorder %s17, 1
    %p61 = por %p59, %p60
    %p63 = scmp.ne.s32.totalorder %s48, %s62
    %p64 = scmp.eq.s32.totalorder %s17, 0
    %p65 = por %p63, %p64
    %s67 = sadd.s32 %s66, 1
    %p70 = scmp.eq.s32.totalorder %s11, 1
    %p71 = scmp.ne.s32.totalorder %s66, %s68
    %p72 = scmp.eq.s32.totalorder %s11, 0
    %p73 = por %p71, %p72
    %p74 = scmp.ne.s32.totalorder %s66, %s68
    %p75 = scmp.eq.s32.totalorder %s16, 1
    %p76 = por %p74, %p75
    %p77 = scmp.ne.s32.totalorder %s68, %s69
    %p78 = scmp.eq.s32.totalorder %s16, 0
    %p79 = por %p77, %p78
    %p80 = scmp.ne.s32.totalorder %s68, %s69
    %p81 = scmp.eq.s32.totalorder %s17, 1
    %p82 = por %p80, %p81
    %p84 = scmp.ne.s32.totalorder %s69, %s83
    %p85 = scmp.eq.s32.totalorder %s17, 0
    %p86 = por %p84, %p85
    %s87 = ssub.s32 %s11, %s18
    %p88 = scmp.eq.s32.totalorder %s87, 0
    %s90 = sadd.s32 %s89, 1
    %s91 = scalar_select %p88, %s89, %s90
    %p94 = pneg %p88
    %p95 = scmp.eq.s32.totalorder %s11, 1
    %p96 = por %p94, %p95
    %p97 = scmp.ne.s32.totalorder %s89, %s92
    %p98 = scmp.eq.s32.totalorder %s11, 0
    %p99 = por %p97, %p98
    %p100 = scmp.ne.s32.totalorder %s89, %s92
    %p101 = scmp.eq.s32.totalorder %s16, 1
    %p102 = por %p100, %p101
    %p103 = scmp.ne.s32.totalorder %s92, %s93
    %p104 = scmp.eq.s32.totalorder %s16, 0
    %p105 = por %p103, %p104
    %p106 = scmp.ne.s32.totalorder %s92, %s93
    %p107 = scmp.eq.s32.totalorder %s17, 1
    %p108 = por %p106, %p107
    %p110 = scmp.ne.s32.totalorder %s93, %s109
    %p111 = scmp.eq.s32.totalorder %s17, 0
    %p112 = por %p110, %p111
    %s113 = ssub.s32 %s11, %s18
    %p114 = scmp.eq.s32.totalorder %s113, 0
    %s116 = sadd.s32 %s115, 1
    %s117 = scalar_select %p114, %s115, %s116
    %p120 = pneg %p114
    %p121 = scmp.eq.s32.totalorder %s11, 1
    %p122 = por %p120, %p121
    %p123 = scmp.ne.s32.totalorder %s115, %s118
    %p124 = scmp.eq.s32.totalorder %s11, 0
    %p125 = por %p123, %p124
    %p126 = scmp.ne.s32.totalorder %s115, %s118
    %p127 = scmp.eq.s32.totalorder %s16, 1
    %p128 = por %p126, %p127
    %p129 = scmp.ne.s32.totalorder %s118, %s119
    %p130 = scmp.eq.s32.totalorder %s16, 0
    %p131 = por %p129, %p130
    %p132 = scmp.ne.s32.totalorder %s118, %s119
    %p133 = scmp.eq.s32.totalorder %s17, 1
    %p134 = por %p132, %p133
    %p136 = scmp.ne.s32.totalorder %s119, %s135
    %p137 = scmp.eq.s32.totalorder %s17, 0
    %p138 = por %p136, %p137
    %p139 = scmp.le.s32.totalorder 1, %s11
    %p140 = scmp.lt.s32.totalorder %s11, 3
    %p141 = pnand %p139, %p140
    %p142 = pneg %p141
    // Predicated region
    $region9: #{convolutional_block.4} parent=5 // pred_check
      _
    $region10: #{convolutional_block.4} parent=5 // pred_check_branch
      %144 = sbr.rel (%p141) target = $region12
    $region11: #{convolutional_block.4} parent=5 // pred_region
      %s145 = ssub.s32 %s11, 1
      // Predicated region
      $region13: #{convolutional_block.4} parent=11 // pred_check
        %p146 = pneg %p58
      $region14: #{convolutional_block.4} parent=11 // pred_check_branch
        %148 = sbr.rel (%p146) target = $region16
      $region15: #{convolutional_block.4} parent=11 // pred_region
        _
      $region16: #{convolutional_block.4} parent=11 // pred_fallthru
        _
      // Predicated region
      $region17: #{convolutional_block.4} parent=11 // pred_check
        %p149 = pneg %p79
      $region18: #{convolutional_block.4} parent=11 // pred_check_branch
        %151 = sbr.rel (%p149) target = $region20
      $region19: #{convolutional_block.4} parent=11 // pred_region
        _
      $region20: #{convolutional_block.4} parent=11 // pred_fallthru
        _
    $region12: #{convolutional_block.4} parent=5 // pred_fallthru
      _
    %p152 = scmp.lt.s32.totalorder %s11, 2
    // Predicated region
    $region21: #{convolutional_block.4} parent=5 // pred_check
      %p153 = pneg %p152
    $region22: #{convolutional_block.4} parent=5 // pred_check_branch
      %155 = sbr.rel (%p153) target = $region24
    $region23: #{convolutional_block.4} parent=5 // pred_region
      // Predicated region
      $region25: #{convolutional_block.4} parent=23 // pred_check
        %p156 = pneg %p31
      $region26: #{convolutional_block.4} parent=23 // pred_check_branch
        %158 = sbr.rel (%p156) target = $region28
      $region27: #{convolutional_block.4} parent=23 // pred_region
        %p159 = scmp.lt.s32.totalorder %s11, 1
        %s160 = scalar_select %p159, %s11, 1
        %s161 = smul.addr %s160, 2
        %s162 = smul.addr %s161, 4
        %s163 = scalar_lea.vmem %s0, %s162
      $region28: #{convolutional_block.4} parent=23 // pred_fallthru
        _
    $region24: #{convolutional_block.4} parent=5 // pred_fallthru
      _
    %p164 = scmp.le.s32.totalorder 1, %s11
    %p165 = scmp.lt.s32.totalorder %s11, 3
    %p166 = pnand %p164, %p165
    %p167 = pneg %p166
    // Predicated region
    $region29: #{convolutional_block.4} parent=5 // pred_check
      _
    $region30: #{convolutional_block.4} parent=5 // pred_check_branch
      %169 = sbr.rel (%p166) target = $region32
    $region31: #{convolutional_block.4} parent=5 // pred_region
      %s170 = ssub.s32 %s11, 1
      %p171 = scmp.lt.s32.totalorder %s16, 1
      %s172 = scalar_select %p171, %s16, 1
      %s173 = smul.addr %s172, 2
      %s174 = smul.addr %s173, 4
      %s175 = scalar_lea.vmem %s0, %s174
      %p176 = pneg %p37
      %p177 = pneg %p34
      %p178 = pneg %p58
      %p179 = pneg %p55
      %p180 = pneg %p79
      %p181 = pneg %p76
      %p182 = pneg %p105
      %p183 = pneg %p102
      %p184 = scmp.lt.s32.totalorder %s16, 1
      %s185 = scalar_select %p184, %s16, 1
      %s186 = smul.addr %s185, 2
      %s187 = smul.addr %s186, 4
      %s188 = scalar_lea.vmem %s3, %s187
      %p189 = pneg %p131
      %p190 = pneg %p128
      %p191 = scmp.lt.s32.totalorder %s16, 1
      %s192 = scalar_select %p191, %s16, 1
      %s193 = smul.addr %s192, 2
      %s194 = scalar_lea.vmem %s4, %s193
      %p195 = scmp.lt.s32.totalorder %s16, 1
      %s196 = scalar_select %p195, %s16, 1
      %s197 = smul.addr %s196, 2
      %s198 = smul.addr %s197, 4
      %s199 = scalar_lea.vmem %s0, %s198
      %p200 = scmp.lt.s32.totalorder %s16, 1
      %s201 = scalar_select %p200, %s16, 1
      %s202 = smul.addr %s201, 2
      %s203 = smul.addr %s202, 4
      %s204 = scalar_lea.vmem %s3, %s203
      %p205 = scmp.lt.s32.totalorder %s16, 1
      %s206 = scalar_select %p205, %s16, 1
      %s207 = smul.addr %s206, 2
      %s208 = scalar_lea.vmem %s4, %s207
      %v210 = vld [vmem:[%s1] sm:$0x1]
      %v211 = vld [vmem:[%s1 + $0x1] sm:$0x1]
      %v212 = vld [vmem:[%s199] sm:$0xf]
      %v213 = vld [vmem:[%s199 + $0x4] sm:$0xf]
      %v214 = vunpack.c.l.bf16 %v212
      %v215 = vunpack.c.l.bf16 %v213
      %v216 = vlaneseq
      %v217 = vshrl.u32 %v216, 7
      %v218 = vsub.s32 0, %v217
      %v219 = vrot.slane %v210, %v218
      %v220 = vmul.f32 %v214, %v219
      %v221 = vmul.f32 %v215, %v219
      %v222 = vlaneseq
      %v223 = vshrl.u32 %v222, 7
      %v224 = vsub.s32 0, %v223
      %v225 = vrot.slane %v211, %v224
      %v226 = vadd.f32 %v220, %v225
      %v227 = vadd.f32 %v221, %v225
      %v228 = vmax.f32 %v226, 0.0
      %v229 = vmax.f32 %v227, 0.0
      %230 = vst [vmem:[#allocation2] sm:$0xff] 0.0
      %231 = vst [vmem:[#allocation2 + $0x18] sm:$0xff] 0.0
      %232 = vst [vmem:[#allocation2 + $0x8] sm:$0xff] %v228
      %233 = vst [vmem:[#allocation2 + $0x10] sm:$0xff] %v229
      %v234 = vld [vmem:[#allocation2 + $0x7] sm:$0xff]
      %v235 = vld [vmem:[#allocation2 + $0xf] sm:$0xff]
      %v236 = vpack.c.bf16 %v235, %v234
      %v237 = vld [vmem:[%s2] sm:$0xf]
      %v238 = vld [vmem:[%s2 + $0x4] sm:$0xf]
      %v239 = vld [vmem:[%s2 + $0x8] sm:$0xf]
      %v240 = vld [vmem:[%s2 + $0xc] sm:$0xf]
      %v241 = vld [vmem:[%s2 + $0x10] sm:$0xf]
      %v242 = vld [vmem:[%s2 + $0x14] sm:$0xf]
      %v243 = vld [vmem:[%s2 + $0x18] sm:$0xf]
      %v244 = vld [vmem:[%s2 + $0x1c] sm:$0xf]
      %v245 = vld [vmem:[%s2 + $0x20] sm:$0xf]
      %v246 = vld [vmem:[%s2 + $0x24] sm:$0xf]
      %v247 = vld [vmem:[%s2 + $0x28] sm:$0xf]
      %v248 = vld [vmem:[%s2 + $0x2c] sm:$0xf]
      %v249 = vld [vmem:[%s2 + $0x30] sm:$0xf]
      %v250 = vld [vmem:[%s2 + $0x34] sm:$0xf]
      %v251 = vld [vmem:[%s2 + $0x38] sm:$0xf]
      %v252 = vld [vmem:[%s2 + $0x3c] sm:$0xf]
      %v253 = vld [vmem:[#allocation2 + $0x8] sm:$0xff]
      %v254 = vld [vmem:[#allocation2 + $0x10] sm:$0xff]
      %v255 = vpack.c.bf16 %v254, %v253
      %s256 = scalar_lea.vmem %s2, 64
      %v257 = vld [vmem:[%s256] sm:$0xf]
      %v258 = vld [vmem:[%s256 + $0x4] sm:$0xf]
      %v259 = vld [vmem:[%s256 + $0x8] sm:$0xf]
      %v260 = vld [vmem:[%s256 + $0xc] sm:$0xf]
      %v261 = vld [vmem:[%s256 + $0x10] sm:$0xf]
      %v262 = vld [vmem:[%s256 + $0x14] sm:$0xf]
      %v263 = vld [vmem:[%s256 + $0x18] sm:$0xf]
      %v264 = vld [vmem:[%s256 + $0x1c] sm:$0xf]
      %v265 = vld [vmem:[%s256 + $0x20] sm:$0xf]
      %v266 = vld [vmem:[%s256 + $0x24] sm:$0xf]
      %v267 = vld [vmem:[%s256 + $0x28] sm:$0xf]
      %v268 = vld [vmem:[%s256 + $0x2c] sm:$0xf]
      %v269 = vld [vmem:[%s256 + $0x30] sm:$0xf]
      %v270 = vld [vmem:[%s256 + $0x34] sm:$0xf]
      %v271 = vld [vmem:[%s256 + $0x38] sm:$0xf]
      %v272 = vld [vmem:[%s256 + $0x3c] sm:$0xf]
      %v289 = vunpack.c.l.b16 %v257
      %v290 = vunpack.c.l.b16 %v258
      %v291 = vunpack.c.l.b16 %v259
      %v292 = vunpack.c.l.b16 %v260
      %v293 = vunpack.c.l.b16 %v261
      %v294 = vunpack.c.l.b16 %v262
      %v295 = vunpack.c.l.b16 %v263
      %v296 = vunpack.c.l.b16 %v264
      %v297 = vunpack.c.l.b16 %v265
      %v298 = vunpack.c.l.b16 %v266
      %v299 = vunpack.c.l.b16 %v267
      %v300 = vunpack.c.l.b16 %v268
      %v301 = vunpack.c.l.b16 %v269
      %v302 = vunpack.c.l.b16 %v270
      %v303 = vunpack.c.l.b16 %v271
      %v304 = vunpack.c.l.b16 %v272
      %v305 = vpack.c.b16 %v290, %v289
      %v306 = vpack.c.b16 %v292, %v291
      %v307 = vpack.c.b16 %v294, %v293
      %v308 = vpack.c.b16 %v296, %v295
      %v309 = vpack.c.b16 %v298, %v297
      %v310 = vpack.c.b16 %v300, %v299
      %v311 = vpack.c.b16 %v302, %v301
      %v312 = vpack.c.b16 %v304, %v303
      %321 = vmatprep.subr.bf16.mxu0 0
      %322 = vmatpush1.bf16.msra.mxu0 %v312
      %323 = vmatprep.subr.bf16.mxu0 0
      %324 = vmatpush1.bf16.msra.mxu0 %v311
      %325 = vmatprep.subr.bf16.mxu0 0
      %326 = vmatpush1.bf16.msra.mxu0 %v310
      %327 = vmatprep.subr.bf16.mxu0 0
      %328 = vmatpush1.bf16.msra.mxu0 %v309
      %329 = vmatprep.subr.bf16.mxu0 0
      %330 = vmatpush1.bf16.msra.mxu0 %v308
      %331 = vmatprep.subr.bf16.mxu0 0
      %332 = vmatpush1.bf16.msra.mxu0 %v307
      %333 = vmatprep.subr.bf16.mxu0 0
      %334 = vmatpush1.bf16.msra.mxu0 %v306
      %335 = vmatprep.subr.bf16.mxu0 0
      %336 = vmatpush1.bf16.msra.mxu0 %v305
      %337 = vmatprep.subr.bf16.mxu0 0
      %338 = vmatpush2.bf16.msra.mxu0 0
      %339 = vmatprep.subr.bf16.mxu0 0
      %340 = vmatpush2.bf16.msra.mxu0 0
      %341 = vmatprep.subr.bf16.mxu0 0
      %342 = vmatpush2.bf16.msra.mxu0 0
      %343 = vmatprep.subr.bf16.mxu0 0
      %344 = vmatpush2.bf16.msra.mxu0 0
      %345 = vmatprep.subr.bf16.mxu0 0
      %346 = vmatpush2.bf16.msra.mxu0 0
      %347 = vmatprep.subr.bf16.mxu0 0
      %348 = vmatpush2.bf16.msra.mxu0 0
      %349 = vmatprep.subr.bf16.mxu0 0
      %350 = vmatpush2.bf16.msra.mxu0 0
      %351 = vmatprep.subr.bf16.mxu0 0
      %352 = vmatpush2.bf16.msra.mxu0 0
      %353 = vmatprep.mubr.bf16.mxu0 0
      %354 = vmatmul.mubr.bf16.gmra.mxu0 %v255
      %v355 = vpop.f32.mrf.mxu0
      %v356 = vadd.f32 0.0, %v355
      %v357 = vpop.f32.mrf.mxu0
      %v358 = vpop.f32.mrf.mxu0
      %v359 = vadd.f32 0.0, %v358
      %v360 = vpop.f32.mrf.mxu0
      %361 = vdwg.mxu0
      %v378 = vunpack.c.l.b16 %v237
      %v379 = vunpack.c.l.b16 %v238
      %v380 = vunpack.c.l.b16 %v239
      %v381 = vunpack.c.l.b16 %v240
      %v382 = vunpack.c.l.b16 %v241
      %v383 = vunpack.c.l.b16 %v242
      %v384 = vunpack.c.l.b16 %v243
      %v385 = vunpack.c.l.b16 %v244
      %v386 = vunpack.c.l.b16 %v245
      %v387 = vunpack.c.l.b16 %v246
      %v388 = vunpack.c.l.b16 %v247
      %v389 = vunpack.c.l.b16 %v248
      %v390 = vunpack.c.l.b16 %v249
      %v391 = vunpack.c.l.b16 %v250
      %v392 = vunpack.c.l.b16 %v251
      %v393 = vunpack.c.l.b16 %v252
      %v394 = vpack.c.b16 %v379, %v378
      %v395 = vpack.c.b16 %v381, %v380
      %v396 = vpack.c.b16 %v383, %v382
      %v397 = vpack.c.b16 %v385, %v384
      %v398 = vpack.c.b16 %v387, %v386
      %v399 = vpack.c.b16 %v389, %v388
      %v400 = vpack.c.b16 %v391, %v390
      %v401 = vpack.c.b16 %v393, %v392
      %410 = vmatprep.subr.bf16.mxu0 0
      %411 = vmatpush1.bf16.msra.mxu0 %v401
      %412 = vmatprep.subr.bf16.mxu0 0
      %413 = vmatpush1.bf16.msra.mxu0 %v400
      %414 = vmatprep.subr.bf16.mxu0 0
      %415 = vmatpush1.bf16.msra.mxu0 %v399
      %416 = vmatprep.subr.bf16.mxu0 0
      %417 = vmatpush1.bf16.msra.mxu0 %v398
      %418 = vmatprep.subr.bf16.mxu0 0
      %419 = vmatpush1.bf16.msra.mxu0 %v397
      %420 = vmatprep.subr.bf16.mxu0 0
      %421 = vmatpush1.bf16.msra.mxu0 %v396
      %422 = vmatprep.subr.bf16.mxu0 0
      %423 = vmatpush1.bf16.msra.mxu0 %v395
      %424 = vmatprep.subr.bf16.mxu0 0
      %425 = vmatpush1.bf16.msra.mxu0 %v394
      %426 = vmatprep.subr.bf16.mxu0 0
      %427 = vmatpush2.bf16.msra.mxu0 0
      %428 = vmatprep.subr.bf16.mxu0 0
      %429 = vmatpush2.bf16.msra.mxu0 0
      %430 = vmatprep.subr.bf16.mxu0 0
      %431 = vmatpush2.bf16.msra.mxu0 0
      %432 = vmatprep.subr.bf16.mxu0 0
      %433 = vmatpush2.bf16.msra.mxu0 0
      %434 = vmatprep.subr.bf16.mxu0 0
      %435 = vmatpush2.bf16.msra.mxu0 0
      %436 = vmatprep.subr.bf16.mxu0 0
      %437 = vmatpush2.bf16.msra.mxu0 0
      %438 = vmatprep.subr.bf16.mxu0 0
      %439 = vmatpush2.bf16.msra.mxu0 0
      %440 = vmatprep.subr.bf16.mxu0 0
      %441 = vmatpush2.bf16.msra.mxu0 0
      %442 = vmatprep.mubr.bf16.mxu0 0
      %443 = vmatmul.mubr.bf16.gmra.mxu0 %v236
      %v444 = vpop.f32.mrf.mxu0
      %v445 = vadd.f32 %v356, %v444
      %v446 = vpop.f32.mrf.mxu0
      %v447 = vpop.f32.mrf.mxu0
      %v448 = vadd.f32 %v359, %v447
      %v449 = vpop.f32.mrf.mxu0
      %450 = vdwg.mxu0
      %v451 = vld [vmem:[#allocation2 + $0x9] sm:$0xff]
      %v452 = vld [vmem:[#allocation2 + $0x11] sm:$0xff]
      %v453 = vpack.c.bf16 %v452, %v451
      %s454 = scalar_lea.vmem %s2, 128
      %v455 = vld [vmem:[%s454] sm:$0xf]
      %v456 = vld [vmem:[%s454 + $0x4] sm:$0xf]
      %v457 = vld [vmem:[%s454 + $0x8] sm:$0xf]
      %v458 = vld [vmem:[%s454 + $0xc] sm:$0xf]
      %v459 = vld [vmem:[%s454 + $0x10] sm:$0xf]
      %v460 = vld [vmem:[%s454 + $0x14] sm:$0xf]
      %v461 = vld [vmem:[%s454 + $0x18] sm:$0xf]
      %v462 = vld [vmem:[%s454 + $0x1c] sm:$0xf]
      %v463 = vld [vmem:[%s454 + $0x20] sm:$0xf]
      %v464 = vld [vmem:[%s454 + $0x24] sm:$0xf]
      %v465 = vld [vmem:[%s454 + $0x28] sm:$0xf]
      %v466 = vld [vmem:[%s454 + $0x2c] sm:$0xf]
      %v467 = vld [vmem:[%s454 + $0x30] sm:$0xf]
      %v468 = vld [vmem:[%s454 + $0x34] sm:$0xf]
      %v469 = vld [vmem:[%s454 + $0x38] sm:$0xf]
      %v470 = vld [vmem:[%s454 + $0x3c] sm:$0xf]
      %v487 = vunpack.c.l.b16 %v455
      %v488 = vunpack.c.l.b16 %v456
      %v489 = vunpack.c.l.b16 %v457
      %v490 = vunpack.c.l.b16 %v458
      %v491 = vunpack.c.l.b16 %v459
      %v492 = vunpack.c.l.b16 %v460
      %v493 = vunpack.c.l.b16 %v461
      %v494 = vunpack.c.l.b16 %v462
      %v495 = vunpack.c.l.b16 %v463
      %v496 = vunpack.c.l.b16 %v464
      %v497 = vunpack.c.l.b16 %v465
      %v498 = vunpack.c.l.b16 %v466
      %v499 = vunpack.c.l.b16 %v467
      %v500 = vunpack.c.l.b16 %v468
      %v501 = vunpack.c.l.b16 %v469
      %v502 = vunpack.c.l.b16 %v470
      %v503 = vpack.c.b16 %v488, %v487
      %v504 = vpack.c.b16 %v490, %v489
      %v505 = vpack.c.b16 %v492, %v491
      %v506 = vpack.c.b16 %v494, %v493
      %v507 = vpack.c.b16 %v496, %v495
      %v508 = vpack.c.b16 %v498, %v497
      %v509 = vpack.c.b16 %v500, %v499
      %v510 = vpack.c.b16 %v502, %v501
      %519 = vmatprep.subr.bf16.mxu0 0
      %520 = vmatpush1.bf16.msra.mxu0 %v510
      %521 = vmatprep.subr.bf16.mxu0 0
      %522 = vmatpush1.bf16.msra.mxu0 %v509
      %523 = vmatprep.subr.bf16.mxu0 0
      %524 = vmatpush1.bf16.msra.mxu0 %v508
      %525 = vmatprep.subr.bf16.mxu0 0
      %526 = vmatpush1.bf16.msra.mxu0 %v507
      %527 = vmatprep.subr.bf16.mxu0 0
      %528 = vmatpush1.bf16.msra.mxu0 %v506
      %529 = vmatprep.subr.bf16.mxu0 0
      %530 = vmatpush1.bf16.msra.mxu0 %v505
      %531 = vmatprep.subr.bf16.mxu0 0
      %532 = vmatpush1.bf16.msra.mxu0 %v504
      %533 = vmatprep.subr.bf16.mxu0 0
      %534 = vmatpush1.bf16.msra.mxu0 %v503
      %535 = vmatprep.subr.bf16.mxu0 0
      %536 = vmatpush2.bf16.msra.mxu0 0
      %537 = vmatprep.subr.bf16.mxu0 0
      %538 = vmatpush2.bf16.msra.mxu0 0
      %539 = vmatprep.subr.bf16.mxu0 0
      %540 = vmatpush2.bf16.msra.mxu0 0
      %541 = vmatprep.subr.bf16.mxu0 0
      %542 = vmatpush2.bf16.msra.mxu0 0
      %543 = vmatprep.subr.bf16.mxu0 0
      %544 = vmatpush2.bf16.msra.mxu0 0
      %545 = vmatprep.subr.bf16.mxu0 0
      %546 = vmatpush2.bf16.msra.mxu0 0
      %547 = vmatprep.subr.bf16.mxu0 0
      %548 = vmatpush2.bf16.msra.mxu0 0
      %549 = vmatprep.subr.bf16.mxu0 0
      %550 = vmatpush2.bf16.msra.mxu0 0
      %551 = vmatprep.mubr.bf16.mxu0 0
      %552 = vmatmul.mubr.bf16.gmra.mxu0 %v453
      %v553 = vpop.f32.mrf.mxu0
      %v554 = vadd.f32 0.0, %v553
      %v555 = vpop.f32.mrf.mxu0
      %v556 = vpop.f32.mrf.mxu0
      %v557 = vadd.f32 0.0, %v556
      %v558 = vpop.f32.mrf.mxu0
      %559 = vdwg.mxu0
      %v560 = vadd.f32 %v445, %v554
      %v561 = vadd.f32 %v448, %v557
      %v562 = vpack.c.bf16 %v561, %v560
      %v564 = vunpack.c.l.b16 %v562
      %v565 = vunpack.c.h.b16 %v562
      %v566 = vpack.c.b16 %v564, %v564
      %v567 = vpack.c.b16 %v565, %v565
      %570 = vst [vmem:[%s204] sm:$0xf] %v566
      %571 = vst [vmem:[%s204 + $0x4] sm:$0xf] %v567
      %v572 = vadd.f32 %v560, %v561
      %v573 = vrot.slane %v572, 4
      %v574 = vadd.f32 %v572, %v573
      %v575 = vrot.slane %v574, 2
      %v576 = vadd.f32 %v574, %v575
      %v577 = vrot.slane %v576, 1
      %v578 = vadd.f32 %v576, %v577
      %v579 = vmul.f32 %v578, 0.0625
      %v580 = vsub.f32 %v560, %v579
      %v581 = vsub.f32 %v561, %v579
      %v582 = vmul.f32 %v580, %v580
      %v583 = vmul.f32 %v581, %v581
      %v584 = vadd.f32 %v582, %v583
      %v585 = vrot.slane %v584, 4
      %v586 = vadd.f32 %v584, %v585
      %v587 = vrot.slane %v586, 2
      %v588 = vadd.f32 %v586, %v587
      %v589 = vrot.slane %v588, 1
      %v590 = vadd.f32 %v588, %v589
      %vm591 = vcmask 1040384
      %v592 = vsel %vm591, %v578, %v590
      %593 = vst [vmem:[%s208] sm:$0x3] %v592
      %p594 = scmp.lt.s32.totalorder %s16, 1
      %s595 = scalar_select %p594, %s16, 1
      %s596 = smul.addr %s595, 2
      %s597 = smul.addr %s596, 4
      %s598 = scalar_lea.vmem %s3, %s597
      %p599 = scmp.lt.s32.totalorder %s16, 1
      %s600 = scalar_select %p599, %s16, 1
      %s601 = smul.addr %s600, 2
      %s602 = scalar_lea.vmem %s4, %s601
      // Predicated region
      $region33: #{convolutional_block.4} parent=31 // pred_check
        %p603 = pneg %p102
      $region34: #{convolutional_block.4} parent=31 // pred_check_branch
        %605 = sbr.rel (%p603) target = $region36
      $region35: #{convolutional_block.4} parent=31 // pred_region
        _
      $region36: #{convolutional_block.4} parent=31 // pred_fallthru
        _
      // Predicated region
      $region37: #{convolutional_block.4} parent=31 // pred_check
        %p606 = pneg %p128
      $region38: #{convolutional_block.4} parent=31 // pred_check_branch
        %608 = sbr.rel (%p606) target = $region40
      $region39: #{convolutional_block.4} parent=31 // pred_region
        _
      $region40: #{convolutional_block.4} parent=31 // pred_fallthru
        _
    $region32: #{convolutional_block.4} parent=5 // pred_fallthru
      _
    %p609 = scmp.le.s32.totalorder 2, %s11
    // Predicated region
    $region41: #{convolutional_block.4} parent=5 // pred_check
      %p610 = pneg %p609
    $region42: #{convolutional_block.4} parent=5 // pred_check_branch
      %612 = sbr.rel (%p610) target = $region44
    $region43: #{convolutional_block.4} parent=5 // pred_region
      %s613 = ssub.s32 %s11, 2
      // Predicated region
      $region45: #{convolutional_block.4} parent=43 // pred_check
        %p614 = pneg %p108
      $region46: #{convolutional_block.4} parent=43 // pred_check_branch
        %616 = sbr.rel (%p614) target = $region48
      $region47: #{convolutional_block.4} parent=43 // pred_region
        %p617 = scmp.lt.s32.totalorder %s17, 1
        %s618 = scalar_select %p617, %s17, 1
        %s619 = smul.addr %s618, 2
        %s620 = smul.addr %s619, 4
        %s621 = scalar_lea.vmem %s3, %s620
      $region48: #{convolutional_block.4} parent=43 // pred_fallthru
        _
      // Predicated region
      $region49: #{convolutional_block.4} parent=43 // pred_check
        %p622 = pneg %p134
      $region50: #{convolutional_block.4} parent=43 // pred_check_branch
        %624 = sbr.rel (%p622) target = $region52
      $region51: #{convolutional_block.4} parent=43 // pred_region
        %p625 = scmp.lt.s32.totalorder %s17, 1
        %s626 = scalar_select %p625, %s17, 1
        %s627 = smul.addr %s626, 2
        %s628 = scalar_lea.vmem %s4, %s627
      $region52: #{convolutional_block.4} parent=43 // pred_fallthru
        _
    $region44: #{convolutional_block.4} parent=5 // pred_fallthru
      _
  $region6: #{convolutional_block.4} parent=0 // loop_footer
    %s15 = sadd.s32 1, %s11
  $region7: #{convolutional_block.4} parent=0 // loop_footer_branch
    %10 = sbr.rel target = $region3
  $region8: #{convolutional_block.4} parent=0 // loop_exit
    _

// kernel: convolutional_block.3
$region0: #{convolutional_block.3}
  #allocation0 [shape = 'u32[]', space=smem, size = 0x4, offset = 0x4, fixed_abs, tag = 'smem constant byte address 0x4 - core index']
  #allocation1 [shape = 'u32[144,128]{1,0:T(1,128)}', space=vmem, size = 0x12000, scoped, tag = 'internal scratch']
  %s0 = inlined_call_operand.vmem [shape: bf16[2,18,128], index: 0, kind: input, shape index: {}]
  %s1 = inlined_call_operand.vmem [shape: bf16[3,128,128], index: 1, kind: input, shape index: {}]
  %s2 = inlined_call_operand.vmem [shape: bf16[2,16,128], index: 2, kind: output, shape index: {0}]
  %s3 = inlined_call_operand.vmem [shape: f32[2,2,128], index: 3, kind: output, shape index: {1}]
  %4 = xla_tuple %s2, %s3
  %s5 = sld [smem:[#allocation0]]
  $region49: #{convolutional_block.3} parent=0
    _
  %s7 = ssub.s32 1, %s5
  %s8 = scalar_select 0, %s7, %s5
  loop: start=0, step=1, limit=4
  $region2: #{convolutional_block.3} parent=0 // loop_pre_header
    _
  $region3: #{convolutional_block.3} parent=0 // loop_header
    %s10 = sphi 0, %s14
    %p11 = scmp.ge.s32.totalorder %s10, 4
    %s20 = sphi 0, %s22
    %s23 = sphi 0, %s20
    %s24 = sphi 0, %s23
    %s40 = sphi 0, %s24
    %s44 = sphi 0, %s44
    %s46 = sphi 0, %s44
    %s47 = sphi 0, %s46
    %s61 = sphi 0, %s47
    %s67 = sphi 0, %s69
    %s70 = sphi 0, %s67
    %s71 = sphi 0, %s70
    %s87 = sphi 0, %s71
    %s93 = sphi 0, %s95
    %s96 = sphi 0, %s93
    %s97 = sphi 0, %s96
    %s113 = sphi 0, %s97
  $region4: #{convolutional_block.3} parent=0 // loop_header_branch
    %13 = sbr.rel (%p11) target = $region8
  $region5: #{convolutional_block.3} parent=0 // loop_body
    %s15 = ssub.s32 %s10, 1
    %s16 = ssub.s32 %s10, 2
    %s17 = sadd.s32 %s10, 1
    %s18 = ssub.s32 %s10, %s17
    %p19 = scmp.eq.s32.totalorder %s18, 0
    %s21 = sadd.s32 %s20, 1
    %s22 = scalar_select %p19, %s20, %s21
    %p25 = pneg %p19
    %p26 = scmp.eq.s32.totalorder %s10, 1
    %p27 = por %p25, %p26
    %p28 = scmp.ne.s32.totalorder %s20, %s23
    %p29 = scmp.eq.s32.totalorder %s10, 0
    %p30 = por %p28, %p29
    %p31 = scmp.ne.s32.totalorder %s20, %s23
    %p32 = scmp.eq.s32.totalorder %s15, 1
    %p33 = por %p31, %p32
    %p34 = scmp.ne.s32.totalorder %s23, %s24
    %p35 = scmp.eq.s32.totalorder %s15, 0
    %p36 = por %p34, %p35
    %p37 = scmp.ne.s32.totalorder %s23, %s24
    %p38 = scmp.eq.s32.totalorder %s16, 1
    %p39 = por %p37, %p38
    %p41 = scmp.ne.s32.totalorder %s24, %s40
    %p42 = scmp.eq.s32.totalorder %s16, 0
    %p43 = por %p41, %p42
    %s45 = sadd.s32 %s44, 1
    %p48 = scmp.eq.s32.totalorder %s10, 1
    %p49 = scmp.ne.s32.totalorder %s44, %s46
    %p50 = scmp.eq.s32.totalorder %s10, 0
    %p51 = por %p49, %p50
    %p52 = scmp.ne.s32.totalorder %s44, %s46
    %p53 = scmp.eq.s32.totalorder %s15, 1
    %p54 = por %p52, %p53
    %p55 = scmp.ne.s32.totalorder %s46, %s47
    %p56 = scmp.eq.s32.totalorder %s15, 0
    %p57 = por %p55, %p56
    %p58 = scmp.ne.s32.totalorder %s46, %s47
    %p59 = scmp.eq.s32.totalorder %s16, 1
    %p60 = por %p58, %p59
    %p62 = scmp.ne.s32.totalorder %s47, %s61
    %p63 = scmp.eq.s32.totalorder %s16, 0
    %p64 = por %p62, %p63
    %s65 = ssub.s32 %s10, %s17
    %p66 = scmp.eq.s32.totalorder %s65, 0
    %s68 = sadd.s32 %s67, 1
    %s69 = scalar_select %p66, %s67, %s68
    %p72 = pneg %p66
    %p73 = scmp.eq.s32.totalorder %s10, 1
    %p74 = por %p72, %p73
    %p75 = scmp.ne.s32.totalorder %s67, %s70
    %p76 = scmp.eq.s32.totalorder %s10, 0
    %p77 = por %p75, %p76
    %p78 = scmp.ne.s32.totalorder %s67, %s70
    %p79 = scmp.eq.s32.totalorder %s15, 1
    %p80 = por %p78, %p79
    %p81 = scmp.ne.s32.totalorder %s70, %s71
    %p82 = scmp.eq.s32.totalorder %s15, 0
    %p83 = por %p81, %p82
    %p84 = scmp.ne.s32.totalorder %s70, %s71
    %p85 = scmp.eq.s32.totalorder %s16, 1
    %p86 = por %p84, %p85
    %p88 = scmp.ne.s32.totalorder %s71, %s87
    %p89 = scmp.eq.s32.totalorder %s16, 0
    %p90 = por %p88, %p89
    %s91 = ssub.s32 %s10, %s17
    %p92 = scmp.eq.s32.totalorder %s91, 0
    %s94 = sadd.s32 %s93, 1
    %s95 = scalar_select %p92, %s93, %s94
    %p98 = pneg %p92
    %p99 = scmp.eq.s32.totalorder %s10, 1
    %p100 = por %p98, %p99
    %p101 = scmp.ne.s32.totalorder %s93, %s96
    %p102 = scmp.eq.s32.totalorder %s10, 0
    %p103 = por %p101, %p102
    %p104 = scmp.ne.s32.totalorder %s93, %s96
    %p105 = scmp.eq.s32.totalorder %s15, 1
    %p106 = por %p104, %p105
    %p107 = scmp.ne.s32.totalorder %s96, %s97
    %p108 = scmp.eq.s32.totalorder %s15, 0
    %p109 = por %p107, %p108
    %p110 = scmp.ne.s32.totalorder %s96, %s97
    %p111 = scmp.eq.s32.totalorder %s16, 1
    %p112 = por %p110, %p111
    %p114 = scmp.ne.s32.totalorder %s97, %s113
    %p115 = scmp.eq.s32.totalorder %s16, 0
    %p116 = por %p114, %p115
    %p117 = scmp.le.s32.totalorder 1, %s10
    %p118 = scmp.lt.s32.totalorder %s10, 3
    %p119 = pnand %p117, %p118
    %p120 = pneg %p119
    // Predicated region
    $region9: #{convolutional_block.3} parent=5 // pred_check
      _
    $region10: #{convolutional_block.3} parent=5 // pred_check_branch
      %122 = sbr.rel (%p119) target = $region12
    $region11: #{convolutional_block.3} parent=5 // pred_region
      %s123 = ssub.s32 %s10, 1
      // Predicated region
      $region13: #{convolutional_block.3} parent=11 // pred_check
        %p124 = pneg %p57
      $region14: #{convolutional_block.3} parent=11 // pred_check_branch
        %126 = sbr.rel (%p124) target = $region16
      $region15: #{convolutional_block.3} parent=11 // pred_region
        _
      $region16: #{convolutional_block.3} parent=11 // pred_fallthru
        _
    $region12: #{convolutional_block.3} parent=5 // pred_fallthru
      _
    %p127 = scmp.lt.s32.totalorder %s10, 2
    // Predicated region
    $region17: #{convolutional_block.3} parent=5 // pred_check
      %p128 = pneg %p127
    $region18: #{convolutional_block.3} parent=5 // pred_check_branch
      %130 = sbr.rel (%p128) target = $region20
    $region19: #{convolutional_block.3} parent=5 // pred_region
      // Predicated region
      $region21: #{convolutional_block.3} parent=19 // pred_check
        %p131 = pneg %p30
      $region22: #{convolutional_block.3} parent=19 // pred_check_branch
        %133 = sbr.rel (%p131) target = $region24
      $region23: #{convolutional_block.3} parent=19 // pred_region
        %p134 = scmp.lt.s32.totalorder %s10, 1
        %s135 = scalar_select %p134, %s10, 1
        %s136 = smul.addr %s135, 3
        %s137 = smul.addr %s136, 4
        %s138 = scalar_lea.vmem %s0, %s137
      $region24: #{convolutional_block.3} parent=19 // pred_fallthru
        _
    $region20: #{convolutional_block.3} parent=5 // pred_fallthru
      _
    %p139 = scmp.le.s32.totalorder 1, %s10
    %p140 = scmp.lt.s32.totalorder %s10, 3
    %p141 = pnand %p139, %p140
    %p142 = pneg %p141
    // Predicated region
    $region25: #{convolutional_block.3} parent=5 // pred_check
      _
    $region26: #{convolutional_block.3} parent=5 // pred_check_branch
      %144 = sbr.rel (%p141) target = $region28
    $region27: #{convolutional_block.3} parent=5 // pred_region
      %s145 = ssub.s32 %s10, 1
      %p146 = scmp.lt.s32.totalorder %s15, 1
      %s147 = scalar_select %p146, %s15, 1
      %s148 = smul.addr %s147, 3
      %s149 = smul.addr %s148, 4
      %s150 = scalar_lea.vmem %s0, %s149
      %p151 = pneg %p36
      %p152 = pneg %p33
      %p153 = pneg %p57
      %p154 = pneg %p54
      %p155 = pneg %p83
      %p156 = pneg %p80
      %p157 = scmp.lt.s32.totalorder %s15, 1
      %s158 = scalar_select %p157, %s15, 1
      %s159 = smul.addr %s158, 2
      %s160 = smul.addr %s159, 4
      %s161 = scalar_lea.vmem %s2, %s160
      %p162 = pneg %p109
      %p163 = pneg %p106
      %p164 = scmp.lt.s32.totalorder %s15, 1
      %s165 = scalar_select %p164, %s15, 1
      %s166 = smul.addr %s165, 2
      %s167 = scalar_lea.vmem %s3, %s166
      %p168 = scmp.lt.s32.totalorder %s15, 1
      %s169 = scalar_select %p168, %s15, 1
      %s170 = smul.addr %s169, 3
      %s171 = smul.addr %s170, 4
      %s172 = scalar_lea.vmem %s0, %s171
      %p173 = scmp.lt.s32.totalorder %s15, 1
      %s174 = scalar_select %p173, %s15, 1
      %s175 = smul.addr %s174, 2
      %s176 = smul.addr %s175, 4
      %s177 = scalar_lea.vmem %s2, %s176
      %p178 = scmp.lt.s32.totalorder %s15, 1
      %s179 = scalar_select %p178, %s15, 1
      %s180 = smul.addr %s179, 2
      %s181 = scalar_lea.vmem %s3, %s180
      %v183 = vld [vmem:[%s172] sm:$0xf]
      %v184 = vld [vmem:[%s172 + $0x4] sm:$0xf]
      %v185 = vld [vmem:[%s172 + $0x8] sm:$0x1]
      %v186 = vld [vmem:[%s172] sm:$0xe]
      %v187 = vld [vmem:[%s1] sm:$0xf]
      %v188 = vld [vmem:[%s1 + $0x4] sm:$0xf]
      %v189 = vld [vmem:[%s1 + $0x8] sm:$0xf]
      %v190 = vld [vmem:[%s1 + $0xc] sm:$0xf]
      %v191 = vld [vmem:[%s1 + $0x10] sm:$0xf]
      %v192 = vld [vmem:[%s1 + $0x14] sm:$0xf]
      %v193 = vld [vmem:[%s1 + $0x18] sm:$0xf]
      %v194 = vld [vmem:[%s1 + $0x1c] sm:$0xf]
      %v195 = vld [vmem:[%s1 + $0x20] sm:$0xf]
      %v196 = vld [vmem:[%s1 + $0x24] sm:$0xf]
      %v197 = vld [vmem:[%s1 + $0x28] sm:$0xf]
      %v198 = vld [vmem:[%s1 + $0x2c] sm:$0xf]
      %v199 = vld [vmem:[%s1 + $0x30] sm:$0xf]
      %v200 = vld [vmem:[%s1 + $0x34] sm:$0xf]
      %v201 = vld [vmem:[%s1 + $0x38] sm:$0xf]
      %v202 = vld [vmem:[%s1 + $0x3c] sm:$0xf]
      %s203 = scalar_lea.vmem %s1, 64
      %v204 = vld [vmem:[%s203] sm:$0xf]
      %v205 = vld [vmem:[%s203 + $0x4] sm:$0xf]
      %v206 = vld [vmem:[%s203 + $0x8] sm:$0xf]
      %v207 = vld [vmem:[%s203 + $0xc] sm:$0xf]
      %v208 = vld [vmem:[%s203 + $0x10] sm:$0xf]
      %v209 = vld [vmem:[%s203 + $0x14] sm:$0xf]
      %v210 = vld [vmem:[%s203 + $0x18] sm:$0xf]
      %v211 = vld [vmem:[%s203 + $0x1c] sm:$0xf]
      %v212 = vld [vmem:[%s203 + $0x20] sm:$0xf]
      %v213 = vld [vmem:[%s203 + $0x24] sm:$0xf]
      %v214 = vld [vmem:[%s203 + $0x28] sm:$0xf]
      %v215 = vld [vmem:[%s203 + $0x2c] sm:$0xf]
      %v216 = vld [vmem:[%s203 + $0x30] sm:$0xf]
      %v217 = vld [vmem:[%s203 + $0x34] sm:$0xf]
      %v218 = vld [vmem:[%s203 + $0x38] sm:$0xf]
      %v219 = vld [vmem:[%s203 + $0x3c] sm:$0xf]
      %v223 = vunpack.c.l.b16 %v183
      %v224 = vunpack.c.l.b16 %v184
      %v225 = vunpack.c.l.b16 %v185
      %v226 = vpack.c.b16 %v224, %v223
      %v227 = vpack.c.b16 %v225, %v225
      %vm228 = vsmask.f32 7424
      %v230 = vshrl.u32 %v226, 16
      %v232 = vshll.u32 %v226, 16
      %v234 = vrot.slane %v232, 1
      %v235 = vor.u32 %v230, %v234
      %v237 = vshll.u32 %v227, 16
      %v239 = vrot.slane %v237, 1
      %v240 = vsel %vm228, %v235, %v239
      %v258 = vunpack.c.l.b16 %v204
      %v259 = vunpack.c.l.b16 %v205
      %v260 = vunpack.c.l.b16 %v206
      %v261 = vunpack.c.l.b16 %v207
      %v262 = vunpack.c.l.b16 %v208
      %v263 = vunpack.c.l.b16 %v209
      %v264 = vunpack.c.l.b16 %v210
      %v265 = vunpack.c.l.b16 %v211
      %v266 = vunpack.c.l.b16 %v212
      %v267 = vunpack.c.l.b16 %v213
      %v268 = vunpack.c.l.b16 %v214
      %v269 = vunpack.c.l.b16 %v215
      %v270 = vunpack.c.l.b16 %v216
      %v271 = vunpack.c.l.b16 %v217
      %v272 = vunpack.c.l.b16 %v218
      %v273 = vunpack.c.l.b16 %v219
      %v274 = vpack.c.b16 %v259, %v258
      %v275 = vpack.c.b16 %v261, %v260
      %v276 = vpack.c.b16 %v263, %v262
      %v277 = vpack.c.b16 %v265, %v264
      %v278 = vpack.c.b16 %v267, %v266
      %v279 = vpack.c.b16 %v269, %v268
      %v280 = vpack.c.b16 %v271, %v270
      %v281 = vpack.c.b16 %v273, %v272
      %290 = vmatprep.subr.bf16.mxu0 0
      %291 = vmatpush1.bf16.msra.mxu0 %v281
      %292 = vmatprep.subr.bf16.mxu0 0
      %293 = vmatpush1.bf16.msra.mxu0 %v280
      %294 = vmatprep.subr.bf16.mxu0 0
      %295 = vmatpush1.bf16.msra.mxu0 %v279
      %296 = vmatprep.subr.bf16.mxu0 0
      %297 = vmatpush1.bf16.msra.mxu0 %v278
      %298 = vmatprep.subr.bf16.mxu0 0
      %299 = vmatpush1.bf16.msra.mxu0 %v277
      %300 = vmatprep.subr.bf16.mxu0 0
      %301 = vmatpush1.bf16.msra.mxu0 %v276
      %302 = vmatprep.subr.bf16.mxu0 0
      %303 = vmatpush1.bf16.msra.mxu0 %v275
      %304 = vmatprep.subr.bf16.mxu0 0
      %305 = vmatpush1.bf16.msra.mxu0 %v274
      %306 = vmatprep.subr.bf16.mxu0 0
      %307 = vmatpush2.bf16.msra.mxu0 0
      %308 = vmatprep.subr.bf16.mxu0 0
      %309 = vmatpush2.bf16.msra.mxu0 0
      %310 = vmatprep.subr.bf16.mxu0 0
      %311 = vmatpush2.bf16.msra.mxu0 0
      %312 = vmatprep.subr.bf16.mxu0 0
      %313 = vmatpush2.bf16.msra.mxu0 0
      %314 = vmatprep.subr.bf16.mxu0 0
      %315 = vmatpush2.bf16.msra.mxu0 0
      %316 = vmatprep.subr.bf16.mxu0 0
      %317 = vmatpush2.bf16.msra.mxu0 0
      %318 = vmatprep.subr.bf16.mxu0 0
      %319 = vmatpush2.bf16.msra.mxu0 0
      %320 = vmatprep.subr.bf16.mxu0 0
      %321 = vmatpush2.bf16.msra.mxu0 0
      %322 = vmatprep.mubr.bf16.mxu0 0
      %323 = vmatmul.mubr.bf16.gmra.mxu0 %v240
      %v324 = vpop.f32.mrf.mxu0
      %v325 = vadd.f32 0.0, %v324
      %v326 = vpop.f32.mrf.mxu0
      %v327 = vpop.f32.mrf.mxu0
      %v328 = vadd.f32 0.0, %v327
      %v329 = vpop.f32.mrf.mxu0
      %330 = vdwg.mxu0
      %v348 = vunpack.c.l.b16 %v187
      %v349 = vunpack.c.l.b16 %v188
      %v350 = vunpack.c.l.b16 %v189
      %v351 = vunpack.c.l.b16 %v190
      %v352 = vunpack.c.l.b16 %v191
      %v353 = vunpack.c.l.b16 %v192
      %v354 = vunpack.c.l.b16 %v193
      %v355 = vunpack.c.l.b16 %v194
      %v356 = vunpack.c.l.b16 %v195
      %v357 = vunpack.c.l.b16 %v196
      %v358 = vunpack.c.l.b16 %v197
      %v359 = vunpack.c.l.b16 %v198
      %v360 = vunpack.c.l.b16 %v199
      %v361 = vunpack.c.l.b16 %v200
      %v362 = vunpack.c.l.b16 %v201
      %v363 = vunpack.c.l.b16 %v202
      %v364 = vpack.c.b16 %v349, %v348
      %v365 = vpack.c.b16 %v351, %v350
      %v366 = vpack.c.b16 %v353, %v352
      %v367 = vpack.c.b16 %v355, %v354
      %v368 = vpack.c.b16 %v357, %v356
      %v369 = vpack.c.b16 %v359, %v358
      %v370 = vpack.c.b16 %v361, %v360
      %v371 = vpack.c.b16 %v363, %v362
      %380 = vmatprep.subr.bf16.mxu0 0
      %381 = vmatpush1.bf16.msra.mxu0 %v371
      %382 = vmatprep.subr.bf16.mxu0 0
      %383 = vmatpush1.bf16.msra.mxu0 %v370
      %384 = vmatprep.subr.bf16.mxu0 0
      %385 = vmatpush1.bf16.msra.mxu0 %v369
      %386 = vmatprep.subr.bf16.mxu0 0
      %387 = vmatpush1.bf16.msra.mxu0 %v368
      %388 = vmatprep.subr.bf16.mxu0 0
      %389 = vmatpush1.bf16.msra.mxu0 %v367
      %390 = vmatprep.subr.bf16.mxu0 0
      %391 = vmatpush1.bf16.msra.mxu0 %v366
      %392 = vmatprep.subr.bf16.mxu0 0
      %393 = vmatpush1.bf16.msra.mxu0 %v365
      %394 = vmatprep.subr.bf16.mxu0 0
      %395 = vmatpush1.bf16.msra.mxu0 %v364
      %396 = vmatprep.subr.bf16.mxu0 0
      %397 = vmatpush2.bf16.msra.mxu0 0
      %398 = vmatprep.subr.bf16.mxu0 0
      %399 = vmatpush2.bf16.msra.mxu0 0
      %400 = vmatprep.subr.bf16.mxu0 0
      %401 = vmatpush2.bf16.msra.mxu0 0
      %402 = vmatprep.subr.bf16.mxu0 0
      %403 = vmatpush2.bf16.msra.mxu0 0
      %404 = vmatprep.subr.bf16.mxu0 0
      %405 = vmatpush2.bf16.msra.mxu0 0
      %406 = vmatprep.subr.bf16.mxu0 0
      %407 = vmatpush2.bf16.msra.mxu0 0
      %408 = vmatprep.subr.bf16.mxu0 0
      %409 = vmatpush2.bf16.msra.mxu0 0
      %410 = vmatprep.subr.bf16.mxu0 0
      %411 = vmatpush2.bf16.msra.mxu0 0
      %412 = vmatprep.mubr.bf16.mxu0 0
      %413 = vmatmul.mubr.bf16.gmra.mxu0 %v226
      %v414 = vpop.f32.mrf.mxu0
      %v415 = vadd.f32 %v325, %v414
      %v416 = vpop.f32.mrf.mxu0
      %v417 = vpop.f32.mrf.mxu0
      %v418 = vadd.f32 %v328, %v417
      %v419 = vpop.f32.mrf.mxu0
      %420 = vdwg.mxu0
      %s421 = scalar_lea.vmem %s1, 128
      %v422 = vld [vmem:[%s421] sm:$0xf]
      %v423 = vld [vmem:[%s421 + $0x4] sm:$0xf]
      %v424 = vld [vmem:[%s421 + $0x8] sm:$0xf]
      %v425 = vld [vmem:[%s421 + $0xc] sm:$0xf]
      %v426 = vld [vmem:[%s421 + $0x10] sm:$0xf]
      %v427 = vld [vmem:[%s421 + $0x14] sm:$0xf]
      %v428 = vld [vmem:[%s421 + $0x18] sm:$0xf]
      %v429 = vld [vmem:[%s421 + $0x1c] sm:$0xf]
      %v430 = vld [vmem:[%s421 + $0x20] sm:$0xf]
      %v431 = vld [vmem:[%s421 + $0x24] sm:$0xf]
      %v432 = vld [vmem:[%s421 + $0x28] sm:$0xf]
      %v433 = vld [vmem:[%s421 + $0x2c] sm:$0xf]
      %v434 = vld [vmem:[%s421 + $0x30] sm:$0xf]
      %v435 = vld [vmem:[%s421 + $0x34] sm:$0xf]
      %v436 = vld [vmem:[%s421 + $0x38] sm:$0xf]
      %v437 = vld [vmem:[%s421 + $0x3c] sm:$0xf]
      %v439 = vunpack.c.l.b16 %v186
      %v440 = vpack.c.b16 %v224, %v439
      %vm441 = vcmask 1046528
      %v442 = vrot.slane %v440, 1
      %v443 = vrot.slane %v227, 1
      %v444 = vsel %vm441, %v442, %v443
      %v462 = vunpack.c.l.b16 %v422
      %v463 = vunpack.c.l.b16 %v423
      %v464 = vunpack.c.l.b16 %v424
      %v465 = vunpack.c.l.b16 %v425
      %v466 = vunpack.c.l.b16 %v426
      %v467 = vunpack.c.l.b16 %v427
      %v468 = vunpack.c.l.b16 %v428
      %v469 = vunpack.c.l.b16 %v429
      %v470 = vunpack.c.l.b16 %v430
      %v471 = vunpack.c.l.b16 %v431
      %v472 = vunpack.c.l.b16 %v432
      %v473 = vunpack.c.l.b16 %v433
      %v474 = vunpack.c.l.b16 %v434
      %v475 = vunpack.c.l.b16 %v435
      %v476 = vunpack.c.l.b16 %v436
      %v477 = vunpack.c.l.b16 %v437
      %v478 = vpack.c.b16 %v463, %v462
      %v479 = vpack.c.b16 %v465, %v464
      %v480 = vpack.c.b16 %v467, %v466
      %v481 = vpack.c.b16 %v469, %v468
      %v482 = vpack.c.b16 %v471, %v470
      %v483 = vpack.c.b16 %v473, %v472
      %v484 = vpack.c.b16 %v475, %v474
      %v485 = vpack.c.b16 %v477, %v476
      %494 = vmatprep.subr.bf16.mxu0 0
      %495 = vmatpush1.bf16.msra.mxu0 %v485
      %496 = vmatprep.subr.bf16.mxu0 0
      %497 = vmatpush1.bf16.msra.mxu0 %v484
      %498 = vmatprep.subr.bf16.mxu0 0
      %499 = vmatpush1.bf16.msra.mxu0 %v483
      %500 = vmatprep.subr.bf16.mxu0 0
      %501 = vmatpush1.bf16.msra.mxu0 %v482
      %502 = vmatprep.subr.bf16.mxu0 0
      %503 = vmatpush1.bf16.msra.mxu0 %v481
      %504 = vmatprep.subr.bf16.mxu0 0
      %505 = vmatpush1.bf16.msra.mxu0 %v480
      %506 = vmatprep.subr.bf16.mxu0 0
      %507 = vmatpush1.bf16.msra.mxu0 %v479
      %508 = vmatprep.subr.bf16.mxu0 0
      %509 = vmatpush1.bf16.msra.mxu0 %v478
      %510 = vmatprep.subr.bf16.mxu0 0
      %511 = vmatpush2.bf16.msra.mxu0 0
      %512 = vmatprep.subr.bf16.mxu0 0
      %513 = vmatpush2.bf16.msra.mxu0 0
      %514 = vmatprep.subr.bf16.mxu0 0
      %515 = vmatpush2.bf16.msra.mxu0 0
      %516 = vmatprep.subr.bf16.mxu0 0
      %517 = vmatpush2.bf16.msra.mxu0 0
      %518 = vmatprep.subr.bf16.mxu0 0
      %519 = vmatpush2.bf16.msra.mxu0 0
      %520 = vmatprep.subr.bf16.mxu0 0
      %521 = vmatpush2.bf16.msra.mxu0 0
      %522 = vmatprep.subr.bf16.mxu0 0
      %523 = vmatpush2.bf16.msra.mxu0 0
      %524 = vmatprep.subr.bf16.mxu0 0
      %525 = vmatpush2.bf16.msra.mxu0 0
      %526 = vmatprep.mubr.bf16.mxu0 0
      %527 = vmatmul.mubr.bf16.gmra.mxu0 %v444
      %v528 = vpop.f32.mrf.mxu0
      %v529 = vadd.f32 0.0, %v528
      %v530 = vpop.f32.mrf.mxu0
      %v531 = vpop.f32.mrf.mxu0
      %v532 = vadd.f32 0.0, %v531
      %v533 = vpop.f32.mrf.mxu0
      %534 = vdwg.mxu0
      %v535 = vadd.f32 %v415, %v529
      %v536 = vadd.f32 %v418, %v532
      %v537 = vpack.c.bf16 %v536, %v535
      %v539 = vunpack.c.l.b16 %v537
      %v540 = vunpack.c.h.b16 %v537
      %v541 = vpack.c.b16 %v539, %v539
      %v542 = vpack.c.b16 %v540, %v540
      %545 = vst [vmem:[%s177] sm:$0xf] %v541
      %546 = vst [vmem:[%s177 + $0x4] sm:$0xf] %v542
      %v547 = vadd.f32 %v535, %v536
      %v548 = vrot.slane %v547, 4
      %v549 = vadd.f32 %v547, %v548
      %v550 = vrot.slane %v549, 2
      %v551 = vadd.f32 %v549, %v550
      %v552 = vrot.slane %v551, 1
      %v553 = vadd.f32 %v551, %v552
      %v554 = vmul.f32 %v553, 0.0625
      %v555 = vsub.f32 %v535, %v554
      %v556 = vsub.f32 %v536, %v554
      %v557 = vmul.f32 %v555, %v555
      %v558 = vmul.f32 %v556, %v556
      %v559 = vadd.f32 %v557, %v558
      %v560 = vrot.slane %v559, 4
      %v561 = vadd.f32 %v559, %v560
      %v562 = vrot.slane %v561, 2
      %v563 = vadd.f32 %v561, %v562
      %v564 = vrot.slane %v563, 1
      %v565 = vadd.f32 %v563, %v564
      %vm566 = vcmask 1040384
      %v567 = vsel %vm566, %v553, %v565
      %568 = vst [vmem:[%s181] sm:$0x3] %v567
      %p569 = scmp.lt.s32.totalorder %s15, 1
      %s570 = scalar_select %p569, %s15, 1
      %s571 = smul.addr %s570, 2
      %s572 = smul.addr %s571, 4
      %s573 = scalar_lea.vmem %s2, %s572
      %p574 = scmp.lt.s32.totalorder %s15, 1
      %s575 = scalar_select %p574, %s15, 1
      %s576 = smul.addr %s575, 2
      %s577 = scalar_lea.vmem %s3, %s576
      // Predicated region
      $region29: #{convolutional_block.3} parent=27 // pred_check
        %p578 = pneg %p80
      $region30: #{convolutional_block.3} parent=27 // pred_check_branch
        %580 = sbr.rel (%p578) target = $region32
      $region31: #{convolutional_block.3} parent=27 // pred_region
        _
      $region32: #{convolutional_block.3} parent=27 // pred_fallthru
        _
      // Predicated region
      $region33: #{convolutional_block.3} parent=27 // pred_check
        %p581 = pneg %p106
      $region34: #{convolutional_block.3} parent=27 // pred_check_branch
        %583 = sbr.rel (%p581) target = $region36
      $region35: #{convolutional_block.3} parent=27 // pred_region
        _
      $region36: #{convolutional_block.3} parent=27 // pred_fallthru
        _
    $region28: #{convolutional_block.3} parent=5 // pred_fallthru
      _
    %p584 = scmp.le.s32.totalorder 2, %s10
    // Predicated region
    $region37: #{convolutional_block.3} parent=5 // pred_check
      %p585 = pneg %p584
    $region38: #{convolutional_block.3} parent=5 // pred_check_branch
      %587 = sbr.rel (%p585) target = $region40
    $region39: #{convolutional_block.3} parent=5 // pred_region
      %s588 = ssub.s32 %s10, 2
      // Predicated region
      $region41: #{convolutional_block.3} parent=39 // pred_check
        %p589 = pneg %p86
      $region42: #{convolutional_block.3} parent=39 // pred_check_branch
        %591 = sbr.rel (%p589) target = $region44
      $region43: #{convolutional_block.3} parent=39 // pred_region
        %p592 = scmp.lt.s32.totalorder %s16, 1
        %s593 = scalar_select %p592, %s16, 1
        %s594 = smul.addr %s593, 2
        %s595 = smul.addr %s594, 4
        %s596 = scalar_lea.vmem %s2, %s595
      $region44: #{convolutional_block.3} parent=39 // pred_fallthru
        _
      // Predicated region
      $region45: #{convolutional_block.3} parent=39 // pred_check
        %p597 = pneg %p112
      $region46: #{convolutional_block.3} parent=39 // pred_check_branch
        %599 = sbr.rel (%p597) target = $region48
      $region47: #{convolutional_block.3} parent=39 // pred_region
        %p600 = scmp.lt.s32.totalorder %s16, 1
        %s601 = scalar_select %p600, %s16, 1
        %s602 = smul.addr %s601, 2
        %s603 = scalar_lea.vmem %s3, %s602
      $region48: #{convolutional_block.3} parent=39 // pred_fallthru
        _
    $region40: #{convolutional_block.3} parent=5 // pred_fallthru
      _
  $region6: #{convolutional_block.3} parent=0 // loop_footer
    %s14 = sadd.s32 1, %s10
  $region7: #{convolutional_block.3} parent=0 // loop_footer_branch
    %9 = sbr.rel target = $region3
  $region8: #{convolutional_block.3} parent=0 // loop_exit
    _

</llo_original>
